<compile_context>
chip_gen: v7x
topology: tpu7x:2x2x1
jax: 0.10.0
libtpu: 0.0.40
codegen_flags: <defaults>
</compile_context>

<pallas_src>
import functools

import jax
import jax.numpy as jnp
from jax.experimental import pallas as pl
from jax.experimental.pallas import tpu as pltpu


def _round_up(x: int, m: int) -> int:
    return (x + m - 1) // m * m


# ----------------------------------------------------------------------------
# Pallas kernel: full Actor forward pass for one batch tile
# ----------------------------------------------------------------------------
def _actor_kernel(
    um_ref,     # [BT, UE+I]   bf16   user ++ mask
    hist_ref,   # [BT, N*SE]   bf16   flattened services history
    whb_ref,    # [N*SE, SE]   bf16   mean-pool-folded history-embedder weight
    bh_ref,     # [1, SE]      f32
    w1um_ref,   # [UE+I, H1]   bf16   first-layer weight (user+mask slice)
    w1h_ref,    # [SE, H1]     bf16   first-layer weight (history slice)
    b1_ref,     # [1, H1]      f32    (BN folded)
    w2_ref,     # [H1, H2]     bf16
    b2_ref,     # [1, H2]      f32
    w3_ref,     # [H2, H3]     bf16
    b3_ref,     # [1, H3]      f32
    w4_ref,     # [H3, OUTP]   bf16   (zero lane-padded to 128)
    b4_ref,     # [1, OUTP]    f32
    out_ref,    # [BT, OUTP]   f32
    *,
    act_max: float,
    act_min: float,
):
    f32 = jnp.float32
    bf16 = jnp.bfloat16

    # ---- history embedder: mean-pool folded into weight, Linear + ReLU ----
    h = jnp.dot(hist_ref[...], whb_ref[...], preferred_element_type=f32) + bh_ref[...]
    h = jnp.maximum(h, 0.0)                                                    # [BT, SE]

    # ---- first layer: concat([user, hist_emb, mask]) @ W1 + b1 (2 MXU passes)
    y = (
        jnp.dot(um_ref[...], w1um_ref[...], preferred_element_type=f32)
        + jnp.dot(h.astype(bf16), w1h_ref[...], preferred_element_type=f32)
        + b1_ref[...]
    )
    y = jnp.maximum(y, 0.0)                                                    # ReLU (BN folded)

    # ---- hidden layers 2, 3 (Linear + folded BN + ReLU) ----
    y = jnp.maximum(jnp.dot(y.astype(bf16), w2_ref[...], preferred_element_type=f32) + b2_ref[...], 0.0)
    y = jnp.maximum(jnp.dot(y.astype(bf16), w3_ref[...], preferred_element_type=f32) + b3_ref[...], 0.0)

    # ---- output layer (lane-padded to 128) ----
    y = jnp.dot(y.astype(bf16), w4_ref[...], preferred_element_type=f32) + b4_ref[...]

    # ---- tanh + affine rescale to [act_min, act_max] ----
    w = jnp.tanh(y)
    out_ref[...] = ((w + 1.0) * ((act_max - act_min) * 0.5) + act_min).astype(out_ref.dtype)


# ----------------------------------------------------------------------------
# Wrapper: parameter setup (BN folding, bf16 weights, padding) + pallas_call
# ----------------------------------------------------------------------------
class ActorPallas:
    B_TILE_MAX = 128  # full MXU row count on v5e; one half-pass on v6e/v7x

    def __init__(self, K, SE, UE, I, layer_sizes=(256, 512, 256),
                 act_max=1.0, act_min=-1.0, key=None):
        if key is None:
            key = jax.random.PRNGKey(0)
        self.K, self.SE, self.UE, self.I = K, SE, UE, I
        self.act_max, self.act_min = float(act_max), float(act_min)
        H1, H2, H3 = layer_sizes
        out_dim = K * SE
        self.out_pad = _round_up(out_dim, 128)   # lane-dense output stores

        f32, bf16 = jnp.float32, jnp.bfloat16
        keys = jax.random.split(key, 11)

        def dense(k, fan_in, fan_out):
            w = jax.random.normal(k, (fan_in, fan_out), f32) * 0.05
            b = jnp.zeros((fan_out,), f32)
            return w, b

        # history embedder Linear(SE, SE)
        wh, bh = dense(keys[0], SE, SE)
        self.wh = wh                          # f32; mean-folded + bf16-cast at call time
        self.bh = (bh + 0.01).reshape(1, SE)  # f32

        # network linears
        w1, b1 = dense(keys[1], UE + SE + I, H1)
        w2, b2 = dense(keys[2], H1, H2)
        w3, b3 = dense(keys[3], H2, H3)
        w4, b4 = dense(keys[4], H3, out_dim)

        # eval-mode BatchNorm1d folded exactly into the preceding Linear
        eps = 1e-5

        def bn_fold(w, b, kg, kb):
            hdim = w.shape[1]
            gamma = 1.0 + 0.1 * jax.random.normal(kg, (hdim,), f32)
            beta = 0.1 * jax.random.normal(kb, (hdim,), f32)
            running_mean = jnp.zeros((hdim,), f32)
            running_var = jnp.ones((hdim,), f32)
            scale = gamma / jnp.sqrt(running_var + eps)
            shift = beta - running_mean * scale
            return w * scale[None, :], b * scale + shift

        w1, b1 = bn_fold(w1, b1, keys[5], keys[6])
        w2, b2 = bn_fold(w2, b2, keys[7], keys[8])
        w3, b3 = bn_fold(w3, b3, keys[9], keys[10])

        # W1 rows: [0:UE]=user, [UE:UE+SE]=history, [UE+SE:]=mask.
        # Merge user+mask slices to match the wrapper's concat([user, mask]).
        self.w1um = jnp.concatenate([w1[:UE], w1[UE + SE:]], axis=0).astype(bf16)
        self.w1h = w1[UE:UE + SE].astype(bf16)
        self.b1 = b1.reshape(1, -1)
        self.w2 = w2.astype(bf16)
        self.b2 = b2.reshape(1, -1)
        self.w3 = w3.astype(bf16)
        self.b3 = b3.reshape(1, -1)
        self.w4 = jnp.pad(w4, ((0, 0), (0, self.out_pad - out_dim))).astype(bf16)
        self.b4 = jnp.pad(b4, (0, self.out_pad - out_dim)).reshape(1, -1)

    def _wh_big(self, N):
        # fold mean over N history steps into the embedder weight: [N*SE, SE]
        return (jnp.tile(self.wh, (N, 1)) * (1.0 / N)).astype(jnp.bfloat16)

    def __call__(self, user, services_history, mask):
        f32, bf16 = jnp.float32, jnp.bfloat16
        B = user.shape[0]
        N = services_history.shape[1]
        out_dim = self.K * self.SE

        # glue: concat user+mask, flatten history, cast MXU operands to bf16
        um = jnp.concatenate([user, mask], axis=1).astype(bf16)           # [B, UE+I]
        hist = services_history.reshape(B, N * self.SE).astype(bf16)      # [B, N*SE]

        # pad batch to a multiple of the batch tile
        bt = min(self.B_TILE_MAX, _round_up(B, 8))
        Bp = _round_up(B, bt)
        if Bp != B:
            um = jnp.pad(um, ((0, Bp - B), (0, 0)))
            hist = jnp.pad(hist, ((0, Bp - B), (0, 0)))
        grid = (Bp // bt,)

        wh_big = self._wh_big(N)
        weights = (wh_big, self.bh, self.w1um, self.w1h, self.b1,
                   self.w2, self.b2, self.w3, self.b3, self.w4, self.b4)

        def batch_spec(feat):
            return pl.BlockSpec((bt, feat), lambda i: (i, 0))

        def resident_spec(arr):
            # same block every grid step -> weight stays VMEM-resident
            return pl.BlockSpec(arr.shape, lambda i: (0, 0))

        kernel = functools.partial(
            _actor_kernel, act_max=self.act_max, act_min=self.act_min
        )

        flat = pl.pallas_call(
            kernel,
            out_shape=jax.ShapeDtypeStruct((Bp, self.out_pad), f32),
            grid=grid,
            in_specs=[batch_spec(um.shape[1]), batch_spec(hist.shape[1])]
                     + [resident_spec(w) for w in weights],
            out_specs=pl.BlockSpec((bt, self.out_pad), lambda i: (i, 0)),
            compiler_params=pltpu.CompilerParams(
                dimension_semantics=("parallel",)),
        )(um, hist, *weights)

        # glue: drop padding, reshape [B, K*SE] -> [B, K, SE]
        return flat[:B, :out_dim].reshape(B, self.K, self.SE)


# ----------------------------------------------------------------------------
# Pure-JAX reference (mirrors the kernel's bf16 MXU operands, f32 accumulate)
# ----------------------------------------------------------------------------
def actor_ref(actor, user, services_history, mask):
    f32, bf16 = jnp.float32, jnp.bfloat16
    B, N, SE = services_history.shape
    dot = functools.partial(jnp.dot, precision=jax.lax.Precision.HIGHEST)
    r = lambda x: x.astype(bf16).astype(f32)   # bf16-round MXU operands

    hist = r(services_history.reshape(B, N * SE))
    um = r(jnp.concatenate([user, mask], axis=1))
    wh_big = actor._wh_big(N).astype(f32)

    h = jnp.maximum(dot(hist, wh_big) + actor.bh, 0.0)
    y = jnp.maximum(dot(um, actor.w1um.astype(f32))
                    + dot(r(h), actor.w1h.astype(f32)) + actor.b1, 0.0)
    y = jnp.maximum(dot(r(y), actor.w2.astype(f32)) + actor.b2, 0.0)
    y = jnp.maximum(dot(r(y), actor.w3.astype(f32)) + actor.b3, 0.0)
    y = dot(r(y), actor.w4.astype(f32)) + actor.b4
    w = jnp.tanh(y[:, :actor.K * actor.SE]).reshape(B, actor.K, actor.SE)
    return (w + 1.0) * (actor.act_max - actor.act_min) * 0.5 + actor.act_min


if __name__ == "__main__":
    # small shapes consistent with the module
    B, K, SE, UE, I, N = 2, 4, 16, 32, 64, 8

    key = jax.random.PRNGKey(0)
    k_user, k_hist, k_mask, k_params = jax.random.split(key, 4)

    user = jax.random.normal(k_user, (B, UE), jnp.float32)
    services_history = jax.random.normal(k_hist, (B, N, SE), jnp.float32)
    mask = (jax.random.uniform(k_mask, (B, I)) > 0.5).astype(jnp.float32)

    actor = ActorPallas(K=K, SE=SE, UE=UE, I=I, key=k_params)

    out = jax.block_until_ready(actor(user, services_history, mask))

    ref = actor_ref(actor, user, services_history, mask)
    assert out.shape == (B, K, SE), out.shape
    assert jnp.allclose(out, ref, atol=1e-4, rtol=1e-4), \
        float(jnp.max(jnp.abs(out - ref)))

    print("KERNEL_OK")
</pallas_src>

<mosaic_0001>
module attributes {stable_mosaic.version = 11 : i64} {
  func.func @_actor_kernel(%arg0: i32, %arg1: memref<8x96xbf16, #tpu.memory_space<vmem>>, %arg2: memref<8x128xbf16, #tpu.memory_space<vmem>>, %arg3: memref<128x16xbf16, #tpu.memory_space<vmem>>, %arg4: memref<1x16xf32, #tpu.memory_space<vmem>>, %arg5: memref<96x256xbf16, #tpu.memory_space<vmem>>, %arg6: memref<16x256xbf16, #tpu.memory_space<vmem>>, %arg7: memref<1x256xf32, #tpu.memory_space<vmem>>, %arg8: memref<256x512xbf16, #tpu.memory_space<vmem>>, %arg9: memref<1x512xf32, #tpu.memory_space<vmem>>, %arg10: memref<512x256xbf16, #tpu.memory_space<vmem>>, %arg11: memref<1x256xf32, #tpu.memory_space<vmem>>, %arg12: memref<256x128xbf16, #tpu.memory_space<vmem>>, %arg13: memref<1x128xf32, #tpu.memory_space<vmem>>, %arg14: memref<8x128xf32, #tpu.memory_space<vmem>>) attributes {dimension_semantics = [#tpu.dimension_semantics<parallel>], iteration_bounds = array<i64: 1>, scalar_prefetch = 0 : i64, scratch_operands = 0 : i64, tpu.core_type = #tpu.core_type<tc>, window_params = [{transform_indices = @transform_0, window_bounds = array<i64: 8, 96>}, {transform_indices = @transform_1, window_bounds = array<i64: 8, 128>}, {pipeline_mode = #tpu.pipeline_mode<synchronous>, transform_indices = @transform_2, window_bounds = array<i64: 128, 16>}, {pipeline_mode = #tpu.pipeline_mode<synchronous>, transform_indices = @transform_3, window_bounds = array<i64: 1, 16>}, {pipeline_mode = #tpu.pipeline_mode<synchronous>, transform_indices = @transform_4, window_bounds = array<i64: 96, 256>}, {pipeline_mode = #tpu.pipeline_mode<synchronous>, transform_indices = @transform_5, window_bounds = array<i64: 16, 256>}, {pipeline_mode = #tpu.pipeline_mode<synchronous>, transform_indices = @transform_6, window_bounds = array<i64: 1, 256>}, {pipeline_mode = #tpu.pipeline_mode<synchronous>, transform_indices = @transform_7, window_bounds = array<i64: 256, 512>}, {pipeline_mode = #tpu.pipeline_mode<synchronous>, transform_indices = @transform_8, window_bounds = array<i64: 1, 512>}, {pipeline_mode = #tpu.pipeline_mode<synchronous>, transform_indices = @transform_9, window_bounds = array<i64: 512, 256>}, {pipeline_mode = #tpu.pipeline_mode<synchronous>, transform_indices = @transform_10, window_bounds = array<i64: 1, 256>}, {pipeline_mode = #tpu.pipeline_mode<synchronous>, transform_indices = @transform_11, window_bounds = array<i64: 256, 128>}, {pipeline_mode = #tpu.pipeline_mode<synchronous>, transform_indices = @transform_12, window_bounds = array<i64: 1, 128>}, {transform_indices = @transform_13, window_bounds = array<i64: 8, 128>}]} {
    %c0 = arith.constant 0 : index
    %c0_0 = arith.constant 0 : index
    %0 = vector.load %arg2[%c0, %c0_0] : memref<8x128xbf16, #tpu.memory_space<vmem>>, vector<8x128xbf16>
    %c0_1 = arith.constant 0 : index
    %c0_2 = arith.constant 0 : index
    %1 = vector.load %arg3[%c0_1, %c0_2] : memref<128x16xbf16, #tpu.memory_space<vmem>>, vector<128x16xbf16>
    %cst = arith.constant dense<0.000000e+00> : vector<8x16xf32>
    %2 = tpu.matmul %0, %1, %cst {dimension_numbers = #tpu.dot_dimension_numbers<[1], [0], [0], [1], [0, 0, 1, 1], [], []>} : vector<8x128xbf16>, vector<128x16xbf16>, vector<8x16xf32> -> vector<8x16xf32>
    %c0_3 = arith.constant 0 : index
    %c0_4 = arith.constant 0 : index
    %3 = vector.load %arg4[%c0_3, %c0_4] : memref<1x16xf32, #tpu.memory_space<vmem>>, vector<1x16xf32>
    %4 = vector.broadcast %3 : vector<1x16xf32> to vector<8x16xf32>
    %5 = arith.addf %2, %4 : vector<8x16xf32>
    %cst_5 = arith.constant 0.000000e+00 : f32
    %6 = vector.broadcast %cst_5 : f32 to vector<8x16xf32>
    %7 = arith.maximumf %5, %6 : vector<8x16xf32>
    %c0_6 = arith.constant 0 : index
    %c0_7 = arith.constant 0 : index
    %8 = vector.load %arg1[%c0_6, %c0_7] : memref<8x96xbf16, #tpu.memory_space<vmem>>, vector<8x96xbf16>
    %c0_8 = arith.constant 0 : index
    %c0_9 = arith.constant 0 : index
    %9 = vector.load %arg5[%c0_8, %c0_9] : memref<96x256xbf16, #tpu.memory_space<vmem>>, vector<96x256xbf16>
    %cst_10 = arith.constant dense<0.000000e+00> : vector<8x256xf32>
    %10 = tpu.matmul %8, %9, %cst_10 {dimension_numbers = #tpu.dot_dimension_numbers<[1], [0], [0], [1], [0, 0, 1, 1], [], []>} : vector<8x96xbf16>, vector<96x256xbf16>, vector<8x256xf32> -> vector<8x256xf32>
    %11 = arith.truncf %7 : vector<8x16xf32> to vector<8x16xbf16>
    %c0_11 = arith.constant 0 : index
    %c0_12 = arith.constant 0 : index
    %12 = vector.load %arg6[%c0_11, %c0_12] : memref<16x256xbf16, #tpu.memory_space<vmem>>, vector<16x256xbf16>
    %cst_13 = arith.constant dense<0.000000e+00> : vector<8x256xf32>
    %13 = tpu.matmul %11, %12, %cst_13 {dimension_numbers = #tpu.dot_dimension_numbers<[1], [0], [0], [1], [0, 0, 1, 1], [], []>} : vector<8x16xbf16>, vector<16x256xbf16>, vector<8x256xf32> -> vector<8x256xf32>
    %14 = arith.addf %10, %13 : vector<8x256xf32>
    %c0_14 = arith.constant 0 : index
    %c0_15 = arith.constant 0 : index
    %15 = vector.load %arg7[%c0_14, %c0_15] : memref<1x256xf32, #tpu.memory_space<vmem>>, vector<1x256xf32>
    %16 = vector.broadcast %15 : vector<1x256xf32> to vector<8x256xf32>
    %17 = arith.addf %14, %16 : vector<8x256xf32>
    %cst_16 = arith.constant 0.000000e+00 : f32
    %18 = vector.broadcast %cst_16 : f32 to vector<8x256xf32>
    %19 = arith.maximumf %17, %18 : vector<8x256xf32>
    %20 = arith.truncf %19 : vector<8x256xf32> to vector<8x256xbf16>
    %c0_17 = arith.constant 0 : index
    %c0_18 = arith.constant 0 : index
    %21 = vector.load %arg8[%c0_17, %c0_18] : memref<256x512xbf16, #tpu.memory_space<vmem>>, vector<256x512xbf16>
    %cst_19 = arith.constant dense<0.000000e+00> : vector<8x512xf32>
    %22 = tpu.matmul %20, %21, %cst_19 {dimension_numbers = #tpu.dot_dimension_numbers<[1], [0], [0], [1], [0, 0, 1, 1], [], []>} : vector<8x256xbf16>, vector<256x512xbf16>, vector<8x512xf32> -> vector<8x512xf32>
    %c0_20 = arith.constant 0 : index
    %c0_21 = arith.constant 0 : index
    %23 = vector.load %arg9[%c0_20, %c0_21] : memref<1x512xf32, #tpu.memory_space<vmem>>, vector<1x512xf32>
    %24 = vector.broadcast %23 : vector<1x512xf32> to vector<8x512xf32>
    %25 = arith.addf %22, %24 : vector<8x512xf32>
    %cst_22 = arith.constant 0.000000e+00 : f32
    %26 = vector.broadcast %cst_22 : f32 to vector<8x512xf32>
    %27 = arith.maximumf %25, %26 : vector<8x512xf32>
    %28 = arith.truncf %27 : vector<8x512xf32> to vector<8x512xbf16>
    %c0_23 = arith.constant 0 : index
    %c0_24 = arith.constant 0 : index
    %29 = vector.load %arg10[%c0_23, %c0_24] : memref<512x256xbf16, #tpu.memory_space<vmem>>, vector<512x256xbf16>
    %cst_25 = arith.constant dense<0.000000e+00> : vector<8x256xf32>
    %30 = tpu.matmul %28, %29, %cst_25 {dimension_numbers = #tpu.dot_dimension_numbers<[1], [0], [0], [1], [0, 0, 1, 1], [], []>} : vector<8x512xbf16>, vector<512x256xbf16>, vector<8x256xf32> -> vector<8x256xf32>
    %c0_26 = arith.constant 0 : index
    %c0_27 = arith.constant 0 : index
    %31 = vector.load %arg11[%c0_26, %c0_27] : memref<1x256xf32, #tpu.memory_space<vmem>>, vector<1x256xf32>
    %32 = vector.broadcast %31 : vector<1x256xf32> to vector<8x256xf32>
    %33 = arith.addf %30, %32 : vector<8x256xf32>
    %cst_28 = arith.constant 0.000000e+00 : f32
    %34 = vector.broadcast %cst_28 : f32 to vector<8x256xf32>
    %35 = arith.maximumf %33, %34 : vector<8x256xf32>
    %36 = arith.truncf %35 : vector<8x256xf32> to vector<8x256xbf16>
    %c0_29 = arith.constant 0 : index
    %c0_30 = arith.constant 0 : index
    %37 = vector.load %arg12[%c0_29, %c0_30] : memref<256x128xbf16, #tpu.memory_space<vmem>>, vector<256x128xbf16>
    %cst_31 = arith.constant dense<0.000000e+00> : vector<8x128xf32>
    %38 = tpu.matmul %36, %37, %cst_31 {dimension_numbers = #tpu.dot_dimension_numbers<[1], [0], [0], [1], [0, 0, 1, 1], [], []>} : vector<8x256xbf16>, vector<256x128xbf16>, vector<8x128xf32> -> vector<8x128xf32>
    %c0_32 = arith.constant 0 : index
    %c0_33 = arith.constant 0 : index
    %39 = vector.load %arg13[%c0_32, %c0_33] : memref<1x128xf32, #tpu.memory_space<vmem>>, vector<1x128xf32>
    %40 = vector.broadcast %39 : vector<1x128xf32> to vector<8x128xf32>
    %41 = arith.addf %38, %40 : vector<8x128xf32>
    %42 = math.tanh %41 : vector<8x128xf32>
    %cst_34 = arith.constant 1.000000e+00 : f32
    %43 = vector.broadcast %cst_34 : f32 to vector<8x128xf32>
    %44 = arith.addf %42, %43 : vector<8x128xf32>
    %cst_35 = arith.constant 1.000000e+00 : f32
    %45 = vector.broadcast %cst_35 : f32 to vector<8x128xf32>
    %46 = arith.mulf %44, %45 : vector<8x128xf32>
    %cst_36 = arith.constant -1.000000e+00 : f32
    %47 = vector.broadcast %cst_36 : f32 to vector<8x128xf32>
    %48 = arith.addf %46, %47 : vector<8x128xf32>
    %c0_37 = arith.constant 0 : index
    %c0_38 = arith.constant 0 : index
    %49 = vector.load %arg14[%c0_37, %c0_38] : memref<8x128xf32, #tpu.memory_space<vmem>>, vector<8x128xf32>
    tpu.vector_store %arg14[%c0_37, %c0_38], %48 {strides = array<i32>} : memref<8x128xf32, #tpu.memory_space<vmem>>, vector<8x128xf32>,
    return
  }
  func.func @transform_0(%arg0: i32) -> (i32, i32) {
    %c0_i32 = arith.constant 0 : i32
    %c0_i32_0 = arith.constant 0 : i32
    return %arg0, %c0_i32 : i32, i32
  }
  func.func @transform_1(%arg0: i32) -> (i32, i32) {
    %c0_i32 = arith.constant 0 : i32
    %c0_i32_0 = arith.constant 0 : i32
    return %arg0, %c0_i32 : i32, i32
  }
  func.func @transform_2(%arg0: i32) -> (i32, i32) {
    %c0_i32 = arith.constant 0 : i32
    %c0_i32_0 = arith.constant 0 : i32
    %c0_i32_1 = arith.constant 0 : i32
    return %c0_i32, %c0_i32_0 : i32, i32
  }
  func.func @transform_3(%arg0: i32) -> (i32, i32) {
    %c0_i32 = arith.constant 0 : i32
    %c0_i32_0 = arith.constant 0 : i32
    %c0_i32_1 = arith.constant 0 : i32
    return %c0_i32, %c0_i32_0 : i32, i32
  }
  func.func @transform_4(%arg0: i32) -> (i32, i32) {
    %c0_i32 = arith.constant 0 : i32
    %c0_i32_0 = arith.constant 0 : i32
    %c0_i32_1 = arith.constant 0 : i32
    return %c0_i32, %c0_i32_0 : i32, i32
  }
  func.func @transform_5(%arg0: i32) -> (i32, i32) {
    %c0_i32 = arith.constant 0 : i32
    %c0_i32_0 = arith.constant 0 : i32
    %c0_i32_1 = arith.constant 0 : i32
    return %c0_i32, %c0_i32_0 : i32, i32
  }
  func.func @transform_6(%arg0: i32) -> (i32, i32) {
    %c0_i32 = arith.constant 0 : i32
    %c0_i32_0 = arith.constant 0 : i32
    %c0_i32_1 = arith.constant 0 : i32
    return %c0_i32, %c0_i32_0 : i32, i32
  }
  func.func @transform_7(%arg0: i32) -> (i32, i32) {
    %c0_i32 = arith.constant 0 : i32
    %c0_i32_0 = arith.constant 0 : i32
    %c0_i32_1 = arith.constant 0 : i32
    return %c0_i32, %c0_i32_0 : i32, i32
  }
  func.func @transform_8(%arg0: i32) -> (i32, i32) {
    %c0_i32 = arith.constant 0 : i32
    %c0_i32_0 = arith.constant 0 : i32
    %c0_i32_1 = arith.constant 0 : i32
    return %c0_i32, %c0_i32_0 : i32, i32
  }
  func.func @transform_9(%arg0: i32) -> (i32, i32) {
    %c0_i32 = arith.constant 0 : i32
    %c0_i32_0 = arith.constant 0 : i32
    %c0_i32_1 = arith.constant 0 : i32
    return %c0_i32, %c0_i32_0 : i32, i32
  }
  func.func @transform_10(%arg0: i32) -> (i32, i32) {
    %c0_i32 = arith.constant 0 : i32
    %c0_i32_0 = arith.constant 0 : i32
    %c0_i32_1 = arith.constant 0 : i32
    return %c0_i32, %c0_i32_0 : i32, i32
  }
  func.func @transform_11(%arg0: i32) -> (i32, i32) {
    %c0_i32 = arith.constant 0 : i32
    %c0_i32_0 = arith.constant 0 : i32
    %c0_i32_1 = arith.constant 0 : i32
    return %c0_i32, %c0_i32_0 : i32, i32
  }
  func.func @transform_12(%arg0: i32) -> (i32, i32) {
    %c0_i32 = arith.constant 0 : i32
    %c0_i32_0 = arith.constant 0 : i32
    %c0_i32_1 = arith.constant 0 : i32
    return %c0_i32, %c0_i32_0 : i32, i32
  }
  func.func @transform_13(%arg0: i32) -> (i32, i32) {
    %c0_i32 = arith.constant 0 : i32
    %c0_i32_0 = arith.constant 0 : i32
    return %arg0, %c0_i32 : i32, i32
  }
}

</mosaic_0001>

<llo_original>
// kernel: tpu_custom_call.1
$region0: #{tpu_custom_call.1}
  #allocation0 [shape = 'u32[]', space=smem, size = 0x4, offset = 0x4, fixed_abs, tag = 'smem constant byte address 0x4 - core index']
  #allocation1 [shape = 'u32[144,128]{1,0:T(1,128)}', space=vmem, size = 0x12000, scoped, tag = 'internal scratch']
  %s0 = inlined_call_operand.vmem [shape: bf16[8,96], index: 0, kind: input, shape index: {}]
  %s1 = inlined_call_operand.vmem [shape: bf16[8,128], index: 1, kind: input, shape index: {}]
  %s2 = inlined_call_operand.vmem [shape: bf16[128,16], index: 2, kind: input, shape index: {}]
  %s3 = inlined_call_operand.vmem [shape: f32[1,16], index: 3, kind: input, shape index: {}]
  %s4 = inlined_call_operand.hbm [shape: bf16[96,256], index: 4, kind: input, shape index: {}]
  %s5 = inlined_call_operand.vmem [shape: bf16[16,256], index: 5, kind: input, shape index: {}]
  %s6 = inlined_call_operand.vmem [shape: f32[1,256], index: 6, kind: input, shape index: {}]
  %s7 = inlined_call_operand.hbm [shape: bf16[256,512], index: 7, kind: input, shape index: {}]
  %s8 = inlined_call_operand.vmem [shape: f32[1,512], index: 8, kind: input, shape index: {}]
  %s9 = inlined_call_operand.hbm [shape: bf16[512,256], index: 9, kind: input, shape index: {}]
  %s10 = inlined_call_operand.vmem [shape: f32[1,256], index: 10, kind: input, shape index: {}]
  %s11 = inlined_call_operand.hbm [shape: bf16[256,128], index: 11, kind: input, shape index: {}]
  %s12 = inlined_call_operand.vmem [shape: f32[1,128], index: 12, kind: input, shape index: {}]
  %s13 = inlined_call_operand.hbm [shape: f32[8,128], index: 13, kind: output, shape index: {}]
  %s14 = sld [smem:[#allocation0]]
  $region78: #{tpu_custom_call.1} parent=0
    _
  %s16 = ssub.s32 1, %s14
  %s17 = scalar_select 0, %s16, %s14
  $region1: #{tpu_custom_call.1} parent=0
    #allocation2 [shape = 'u8[49152]{0}', space=vmem, size = 0xc000, scoped, tag = 'input window, operand 4, single buffered']
    #allocation3 [shape = 's32[1]{0}', space=sflag, size = 0x4, scoped, tag = 'scoped memory for tpu_custom_call.1']
    #allocation4 [shape = 's32[1]{0}', space=sflag, size = 0x4, scoped, tag = 'scoped memory for tpu_custom_call.1']
    #allocation5 [shape = 'u8[262144]{0}', space=vmem, size = 0x40000, scoped, tag = 'input window, operand 7, single buffered']
    #allocation6 [shape = 's32[1]{0}', space=sflag, size = 0x4, scoped, tag = 'scoped memory for tpu_custom_call.1']
    #allocation7 [shape = 'u8[262144]{0}', space=vmem, size = 0x40000, scoped, tag = 'input window, operand 9, single buffered']
    #allocation8 [shape = 'u8[65536]{0}', space=vmem, size = 0x10000, scoped, tag = 'input window, operand 11, single buffered']
    #allocation9 [shape = 's32[1]{0}', space=sflag, size = 0x4, scoped, tag = 'scoped memory for tpu_custom_call.1']
    #allocation10 [shape = 'u8[4096]{0}', space=vmem, size = 0x1000, scoped, tag = 'output window, operand 0, single buffered']
    %18 = vsyncpa [#allocation3], 0
    %19 = vsyncpa [#allocation6], 0
    %20 = vsyncpa [#allocation9], 0
    %21 = vsyncpa [#allocation4], 0
    // Predicated region
    $region2: #{tpu_custom_call.1} parent=1 // pred_check
      _
    $region3: #{tpu_custom_call.1} parent=1 // pred_check_branch
      %23 = sbr.rel (0) target = $region5
    $region4: #{tpu_custom_call.1} parent=1 // pred_region
      _
    $region5: #{tpu_custom_call.1} parent=1 // pred_fallthru
      _
    // Predicated region
    $region6: #{tpu_custom_call.1} parent=1 // pred_check
      _
    $region7: #{tpu_custom_call.1} parent=1 // pred_check_branch
      %25 = sbr.rel (0) target = $region9
    $region8: #{tpu_custom_call.1} parent=1 // pred_region
      _
    $region9: #{tpu_custom_call.1} parent=1 // pred_fallthru
      _
    // Predicated region
    $region10: #{tpu_custom_call.1} parent=1 // pred_check
      _
    $region11: #{tpu_custom_call.1} parent=1 // pred_check_branch
      %27 = sbr.rel (0) target = $region13
    $region12: #{tpu_custom_call.1} parent=1 // pred_region
      _
    $region13: #{tpu_custom_call.1} parent=1 // pred_fallthru
      _
    // Predicated region
    $region14: #{tpu_custom_call.1} parent=1 // pred_check
      _
    $region15: #{tpu_custom_call.1} parent=1 // pred_check_branch
      %29 = sbr.rel (0) target = $region17
    $region16: #{tpu_custom_call.1} parent=1 // pred_region
      _
    $region17: #{tpu_custom_call.1} parent=1 // pred_fallthru
      _
    // Predicated region
    $region18: #{tpu_custom_call.1} parent=1 // pred_check
      _
    $region19: #{tpu_custom_call.1} parent=1 // pred_check_branch
      %31 = sbr.rel (0) target = $region21
    $region20: #{tpu_custom_call.1} parent=1 // pred_region
      %s33 = ssub.s32 1536, 1536
      %34 = vsyncadd [#allocation3], %s33
      %s35 = sshll.u32 [#allocation2], 4
      %s36 = int_to_ptr.vmem [resolvable:$true] %s35
      %41 = dma.hbm_to_vmem [thread:$0]  %s4, 1536, %s36, [#allocation3], 128, 128, 8
    $region21: #{tpu_custom_call.1} parent=1 // pred_fallthru
      _
    // Predicated region
    $region22: #{tpu_custom_call.1} parent=1 // pred_check
      _
    $region23: #{tpu_custom_call.1} parent=1 // pred_check_branch
      %43 = sbr.rel (0) target = $region25
    $region24: #{tpu_custom_call.1} parent=1 // pred_region
      _
    $region25: #{tpu_custom_call.1} parent=1 // pred_fallthru
      _
    // Predicated region
    $region26: #{tpu_custom_call.1} parent=1 // pred_check
      _
    $region27: #{tpu_custom_call.1} parent=1 // pred_check_branch
      %45 = sbr.rel (0) target = $region29
    $region28: #{tpu_custom_call.1} parent=1 // pred_region
      _
    $region29: #{tpu_custom_call.1} parent=1 // pred_fallthru
      _
    // Predicated region
    $region30: #{tpu_custom_call.1} parent=1 // pred_check
      _
    $region31: #{tpu_custom_call.1} parent=1 // pred_check_branch
      %47 = sbr.rel (0) target = $region33
    $region32: #{tpu_custom_call.1} parent=1 // pred_region
      %s49 = ssub.s32 8192, 8192
      %50 = vsyncadd [#allocation6], %s49
      %s51 = sshll.u32 [#allocation5], 4
      %s52 = int_to_ptr.vmem [resolvable:$true] %s51
      %57 = dma.hbm_to_vmem [thread:$0]  %s7, 8192, %s52, [#allocation6], 256, 256, 16
    $region33: #{tpu_custom_call.1} parent=1 // pred_fallthru
      _
    // Predicated region
    $region34: #{tpu_custom_call.1} parent=1 // pred_check
      _
    $region35: #{tpu_custom_call.1} parent=1 // pred_check_branch
      %59 = sbr.rel (0) target = $region37
    $region36: #{tpu_custom_call.1} parent=1 // pred_region
      _
    $region37: #{tpu_custom_call.1} parent=1 // pred_fallthru
      _
    // Predicated region
    $region38: #{tpu_custom_call.1} parent=1 // pred_check
      _
    $region39: #{tpu_custom_call.1} parent=1 // pred_check_branch
      %61 = sbr.rel (0) target = $region41
    $region40: #{tpu_custom_call.1} parent=1 // pred_region
      %s63 = ssub.s32 8192, 8192
      %64 = vsyncadd [#allocation6], %s63
      %s65 = sshll.u32 [#allocation7], 4
      %s66 = int_to_ptr.vmem [resolvable:$true] %s65
      %71 = dma.hbm_to_vmem [thread:$0]  %s9, 8192, %s66, [#allocation6], 128, 128, 8
    $region41: #{tpu_custom_call.1} parent=1 // pred_fallthru
      _
    // Predicated region
    $region42: #{tpu_custom_call.1} parent=1 // pred_check
      _
    $region43: #{tpu_custom_call.1} parent=1 // pred_check_branch
      %73 = sbr.rel (0) target = $region45
    $region44: #{tpu_custom_call.1} parent=1 // pred_region
      _
    $region45: #{tpu_custom_call.1} parent=1 // pred_fallthru
      _
    // Predicated region
    $region46: #{tpu_custom_call.1} parent=1 // pred_check
      _
    $region47: #{tpu_custom_call.1} parent=1 // pred_check_branch
      %75 = sbr.rel (0) target = $region49
    $region48: #{tpu_custom_call.1} parent=1 // pred_region
      %s77 = ssub.s32 2048, 2048
      %78 = vsyncadd [#allocation9], %s77
      %s79 = sshll.u32 [#allocation8], 4
      %s80 = int_to_ptr.vmem [resolvable:$true] %s79
      %85 = dma.hbm_to_vmem [thread:$0]  %s11, 2048, %s80, [#allocation9], 64, 64, 4
    $region49: #{tpu_custom_call.1} parent=1 // pred_fallthru
      _
    // Predicated region
    $region50: #{tpu_custom_call.1} parent=1 // pred_check
      _
    $region51: #{tpu_custom_call.1} parent=1 // pred_check_branch
      %87 = sbr.rel (0) target = $region53
    $region52: #{tpu_custom_call.1} parent=1 // pred_region
      _
    $region53: #{tpu_custom_call.1} parent=1 // pred_fallthru
      _
    // Predicated region
    $region54: #{tpu_custom_call.1} parent=1 // pred_check
      _
    $region55: #{tpu_custom_call.1} parent=1 // pred_check_branch
      %89 = sbr.rel (0) target = $region57
    $region56: #{tpu_custom_call.1} parent=1 // pred_region
      %90 = dma.done [#allocation3], 1536
    $region57: #{tpu_custom_call.1} parent=1 // pred_fallthru
      _
    // Predicated region
    $region58: #{tpu_custom_call.1} parent=1 // pred_check
      _
    $region59: #{tpu_custom_call.1} parent=1 // pred_check_branch
      %92 = sbr.rel (0) target = $region61
    $region60: #{tpu_custom_call.1} parent=1 // pred_region
      %93 = dma.done [#allocation6], 8192
    $region61: #{tpu_custom_call.1} parent=1 // pred_fallthru
      _
    // Predicated region
    $region62: #{tpu_custom_call.1} parent=1 // pred_check
      _
    $region63: #{tpu_custom_call.1} parent=1 // pred_check_branch
      %95 = sbr.rel (0) target = $region65
    $region64: #{tpu_custom_call.1} parent=1 // pred_region
      %96 = dma.done [#allocation6], 8192
    $region65: #{tpu_custom_call.1} parent=1 // pred_fallthru
      _
    // Predicated region
    $region66: #{tpu_custom_call.1} parent=1 // pred_check
      _
    $region67: #{tpu_custom_call.1} parent=1 // pred_check_branch
      %98 = sbr.rel (0) target = $region69
    $region68: #{tpu_custom_call.1} parent=1 // pred_region
      %99 = dma.done [#allocation9], 2048
    $region69: #{tpu_custom_call.1} parent=1 // pred_fallthru
      _
    %v101 = vld [vmem:[%s1] sm:$0xf]
    %v102 = vld [vmem:[%s2] sm:$0xf]
    %v103 = vld [vmem:[%s2 + $0x4] sm:$0xf]
    %v104 = vld [vmem:[%s2 + $0x8] sm:$0xf]
    %v105 = vld [vmem:[%s2 + $0xc] sm:$0xf]
    %v106 = vld [vmem:[%s2 + $0x10] sm:$0xf]
    %v107 = vld [vmem:[%s2 + $0x14] sm:$0xf]
    %v108 = vld [vmem:[%s2 + $0x18] sm:$0xf]
    %v109 = vld [vmem:[%s2 + $0x1c] sm:$0xf]
    %v110 = vld [vmem:[%s2 + $0x20] sm:$0xf]
    %v111 = vld [vmem:[%s2 + $0x24] sm:$0xf]
    %v112 = vld [vmem:[%s2 + $0x28] sm:$0xf]
    %v113 = vld [vmem:[%s2 + $0x2c] sm:$0xf]
    %v114 = vld [vmem:[%s2 + $0x30] sm:$0xf]
    %v115 = vld [vmem:[%s2 + $0x34] sm:$0xf]
    %v116 = vld [vmem:[%s2 + $0x38] sm:$0xf]
    %v117 = vld [vmem:[%s2 + $0x3c] sm:$0xf]
    %v118 = vld [vmem:[%s3] sm:$0x1]
    %v120 = vlaneseq
    %v121 = vshrl.u32 %v120, 7
    %v122 = vsub.s32 0, %v121
    %v123 = vrot.slane %v118, %v122
    %v141 = vunpack.c.l.b16 %v102
    %v142 = vunpack.c.l.b16 %v103
    %v143 = vunpack.c.l.b16 %v104
    %v144 = vunpack.c.l.b16 %v105
    %v145 = vunpack.c.l.b16 %v106
    %v146 = vunpack.c.l.b16 %v107
    %v147 = vunpack.c.l.b16 %v108
    %v148 = vunpack.c.l.b16 %v109
    %v149 = vunpack.c.l.b16 %v110
    %v150 = vunpack.c.l.b16 %v111
    %v151 = vunpack.c.l.b16 %v112
    %v152 = vunpack.c.l.b16 %v113
    %v153 = vunpack.c.l.b16 %v114
    %v154 = vunpack.c.l.b16 %v115
    %v155 = vunpack.c.l.b16 %v116
    %v156 = vunpack.c.l.b16 %v117
    %v157 = vpack.c.b16 %v142, %v141
    %v158 = vpack.c.b16 %v144, %v143
    %v159 = vpack.c.b16 %v146, %v145
    %v160 = vpack.c.b16 %v148, %v147
    %v161 = vpack.c.b16 %v150, %v149
    %v162 = vpack.c.b16 %v152, %v151
    %v163 = vpack.c.b16 %v154, %v153
    %v164 = vpack.c.b16 %v156, %v155
    %173 = vmatprep.subr.bf16.mxu0 0
    %174 = vmatpush1.bf16.msra.mxu0 %v157
    %175 = vmatprep.subr.bf16.mxu0 0
    %176 = vmatpush1.bf16.msra.mxu0 %v158
    %177 = vmatprep.subr.bf16.mxu0 0
    %178 = vmatpush1.bf16.msra.mxu0 %v159
    %179 = vmatprep.subr.bf16.mxu0 0
    %180 = vmatpush1.bf16.msra.mxu0 %v160
    %181 = vmatprep.subr.bf16.mxu0 0
    %182 = vmatpush1.bf16.msra.mxu0 %v161
    %183 = vmatprep.subr.bf16.mxu0 0
    %184 = vmatpush1.bf16.msra.mxu0 %v162
    %185 = vmatprep.subr.bf16.mxu0 0
    %186 = vmatpush1.bf16.msra.mxu0 %v163
    %187 = vmatprep.subr.bf16.mxu0 0
    %188 = vmatpush1.bf16.msra.mxu0 %v164
    %189 = vmatprep.subr.bf16.mxu0 0
    %190 = vmatpush1.bf16.msra.mxu0 0
    %191 = vmatprep.subr.bf16.mxu0 0
    %192 = vmatpush1.bf16.msra.mxu0 0
    %193 = vmatprep.subr.bf16.mxu0 0
    %194 = vmatpush1.bf16.msra.mxu0 0
    %195 = vmatprep.subr.bf16.mxu0 0
    %196 = vmatpush1.bf16.msra.mxu0 0
    %197 = vmatprep.subr.bf16.mxu0 0
    %198 = vmatpush1.bf16.msra.mxu0 0
    %199 = vmatprep.subr.bf16.mxu0 0
    %200 = vmatpush1.bf16.msra.mxu0 0
    %201 = vmatprep.subr.bf16.mxu0 0
    %202 = vmatpush1.bf16.msra.mxu0 0
    %203 = vmatprep.subr.bf16.mxu0 0
    %204 = vmatpush1.bf16.msra.mxu0 0
    %205 = vmatprep.mubr.bf16.mxu0 0
    %206 = vmatmul.mubr.bf16.gmra.mrb[0].mxu0 %v101
    %v207 = vpop.f32.mrb[0].mxu0
    %v208 = vadd.f32 %v123, %v207
    %v209 = vpop.f32.mrb[0].mxu0
    %v210 = vpop.f32.mrb[0].mxu0
    %v211 = vpop.f32.mrb[0].mxu0
    %212 = vdwg.mxu0
    %v213 = vmax.f32 %v208, 0.0
    %v214 = vld [vmem:[%s0] sm:$0xf]
    %v215 = vld [vmem:[#allocation2] sm:$0xff]
    %v216 = vld [vmem:[#allocation2 + $0x8] sm:$0xff]
    %v217 = vld [vmem:[#allocation2 + $0x10] sm:$0xff]
    %v218 = vld [vmem:[#allocation2 + $0x18] sm:$0xff]
    %v219 = vld [vmem:[#allocation2 + $0x20] sm:$0xff]
    %v220 = vld [vmem:[#allocation2 + $0x28] sm:$0xff]
    %v221 = vld [vmem:[#allocation2 + $0x30] sm:$0xff]
    %v222 = vld [vmem:[#allocation2 + $0x38] sm:$0xff]
    %v223 = vld [vmem:[#allocation2 + $0x40] sm:$0xff]
    %v224 = vld [vmem:[#allocation2 + $0x48] sm:$0xff]
    %v225 = vld [vmem:[#allocation2 + $0x50] sm:$0xff]
    %v226 = vld [vmem:[#allocation2 + $0x58] sm:$0xff]
    %v227 = vpack.c.bf16 %v213, %v213
    %v228 = vld [vmem:[%s5] sm:$0xff]
    %v229 = vld [vmem:[%s5 + $0x8] sm:$0xff]
    %v232 = vunpack.c.l.b16 %v228
    %v233 = vunpack.c.h.b16 %v228
    %v234 = vunpack.c.l.b16 %v229
    %v235 = vunpack.c.h.b16 %v229
    %v236 = vpack.c.b16 %v234, %v232
    %v237 = vpack.c.b16 %v235, %v233
    %vm240 = vcmask 130048
    %v242 = vsel %vm240, %v227, 0
    %244 = vmatprep.subr.bf16.mxu0 %v237
    %245 = vmatpush1.bf16.msra.mxu0 %v236
    %246 = vmatprep.subr.bf16.mxu0 0
    %247 = vmatpush1.bf16.msra.mxu0 0
    %248 = vmatprep.subr.bf16.mxu0 0
    %249 = vmatpush1.bf16.msra.mxu0 0
    %250 = vmatprep.subr.bf16.mxu0 0
    %251 = vmatpush1.bf16.msra.mxu0 0
    %252 = vmatprep.subr.bf16.mxu0 0
    %253 = vmatpush1.bf16.msra.mxu0 0
    %254 = vmatprep.subr.bf16.mxu0 0
    %255 = vmatpush1.bf16.msra.mxu0 0
    %256 = vmatprep.subr.bf16.mxu0 0
    %257 = vmatpush1.bf16.msra.mxu0 0
    %258 = vmatprep.subr.bf16.mxu0 0
    %259 = vmatpush1.bf16.msra.mxu0 0
    %260 = vmatprep.subr.bf16.mxu0 0
    %261 = vmatpush1.bf16.msra.mxu0 0
    %262 = vmatprep.subr.bf16.mxu0 0
    %263 = vmatpush1.bf16.msra.mxu0 0
    %264 = vmatprep.subr.bf16.mxu0 0
    %265 = vmatpush1.bf16.msra.mxu0 0
    %266 = vmatprep.subr.bf16.mxu0 0
    %267 = vmatpush1.bf16.msra.mxu0 0
    %268 = vmatprep.subr.bf16.mxu0 0
    %269 = vmatpush1.bf16.msra.mxu0 0
    %270 = vmatprep.subr.bf16.mxu0 0
    %271 = vmatpush1.bf16.msra.mxu0 0
    %272 = vmatprep.subr.bf16.mxu0 0
    %273 = vmatpush1.bf16.msra.mxu0 0
    %274 = vmatprep.subr.bf16.mxu0 0
    %275 = vmatpush1.bf16.msra.mxu0 0
    %276 = vmatprep.mubr.bf16.mxu0 0
    %277 = vmatmul.mubr.bf16.gmra.mrb[0].mxu0 %v242
    %v278 = vpop.f32.mrb[0].mxu0
    %v279 = vadd.f32 0.0, %v278
    %v280 = vpop.f32.mrb[0].mxu0
    %v281 = vadd.f32 0.0, %v280
    %v282 = vpop.f32.mrb[0].mxu0
    %v283 = vpop.f32.mrb[0].mxu0
    %284 = vdwg.mxu0
    %v297 = vunpack.c.l.b16 %v215
    %v298 = vunpack.c.h.b16 %v215
    %v299 = vunpack.c.l.b16 %v216
    %v300 = vunpack.c.h.b16 %v216
    %v301 = vunpack.c.l.b16 %v217
    %v302 = vunpack.c.h.b16 %v217
    %v303 = vunpack.c.l.b16 %v218
    %v304 = vunpack.c.h.b16 %v218
    %v305 = vunpack.c.l.b16 %v219
    %v306 = vunpack.c.h.b16 %v219
    %v307 = vunpack.c.l.b16 %v220
    %v308 = vunpack.c.h.b16 %v220
    %v309 = vunpack.c.l.b16 %v221
    %v310 = vunpack.c.h.b16 %v221
    %v311 = vunpack.c.l.b16 %v222
    %v312 = vunpack.c.h.b16 %v222
    %v313 = vunpack.c.l.b16 %v223
    %v314 = vunpack.c.h.b16 %v223
    %v315 = vunpack.c.l.b16 %v224
    %v316 = vunpack.c.h.b16 %v224
    %v317 = vunpack.c.l.b16 %v225
    %v318 = vunpack.c.h.b16 %v225
    %v319 = vunpack.c.l.b16 %v226
    %v320 = vunpack.c.h.b16 %v226
    %v321 = vpack.c.b16 %v299, %v297
    %v322 = vpack.c.b16 %v300, %v298
    %v323 = vpack.c.b16 %v303, %v301
    %v324 = vpack.c.b16 %v304, %v302
    %v325 = vpack.c.b16 %v307, %v305
    %v326 = vpack.c.b16 %v308, %v306
    %v327 = vpack.c.b16 %v311, %v309
    %v328 = vpack.c.b16 %v312, %v310
    %v329 = vpack.c.b16 %v315, %v313
    %v330 = vpack.c.b16 %v316, %v314
    %v331 = vpack.c.b16 %v319, %v317
    %v332 = vpack.c.b16 %v320, %v318
    %vm345 = vcmask 785408
    %v347 = vsel %vm345, %v214, 0
    %349 = vmatprep.subr.bf16.mxu0 %v322
    %350 = vmatpush1.bf16.msra.mxu0 %v321
    %351 = vmatprep.subr.bf16.mxu0 %v324
    %352 = vmatpush1.bf16.msra.mxu0 %v323
    %353 = vmatprep.subr.bf16.mxu0 %v326
    %354 = vmatpush1.bf16.msra.mxu0 %v325
    %355 = vmatprep.subr.bf16.mxu0 %v328
    %356 = vmatpush1.bf16.msra.mxu0 %v327
    %357 = vmatprep.subr.bf16.mxu0 %v330
    %358 = vmatpush1.bf16.msra.mxu0 %v329
    %359 = vmatprep.subr.bf16.mxu0 %v332
    %360 = vmatpush1.bf16.msra.mxu0 %v331
    %361 = vmatprep.subr.bf16.mxu0 0
    %362 = vmatpush1.bf16.msra.mxu0 0
    %363 = vmatprep.subr.bf16.mxu0 0
    %364 = vmatpush1.bf16.msra.mxu0 0
    %365 = vmatprep.subr.bf16.mxu0 0
    %366 = vmatpush1.bf16.msra.mxu0 0
    %367 = vmatprep.subr.bf16.mxu0 0
    %368 = vmatpush1.bf16.msra.mxu0 0
    %369 = vmatprep.subr.bf16.mxu0 0
    %370 = vmatpush1.bf16.msra.mxu0 0
    %371 = vmatprep.subr.bf16.mxu0 0
    %372 = vmatpush1.bf16.msra.mxu0 0
    %373 = vmatprep.subr.bf16.mxu0 0
    %374 = vmatpush1.bf16.msra.mxu0 0
    %375 = vmatprep.subr.bf16.mxu0 0
    %376 = vmatpush1.bf16.msra.mxu0 0
    %377 = vmatprep.subr.bf16.mxu0 0
    %378 = vmatpush1.bf16.msra.mxu0 0
    %379 = vmatprep.subr.bf16.mxu0 0
    %380 = vmatpush1.bf16.msra.mxu0 0
    %381 = vmatprep.mubr.bf16.mxu0 0
    %382 = vmatmul.mubr.bf16.gmra.mrb[0].mxu0 %v347
    %v383 = vpop.f32.mrb[0].mxu0
    %v384 = vadd.f32 %v279, %v383
    %v385 = vpop.f32.mrb[0].mxu0
    %v386 = vadd.f32 %v281, %v385
    %v387 = vpop.f32.mrb[0].mxu0
    %v388 = vpop.f32.mrb[0].mxu0
    %389 = vdwg.mxu0
    %v390 = vld [vmem:[%s6] sm:$0x3]
    %v392 = vlaneseq
    %v393 = vshrl.u32 %v392, 7
    %v394 = vsub.s32 0, %v393
    %v395 = vrot.slane %v390, %v394
    %v396 = vlaneseq
    %v397 = vshrl.u32 %v396, 7
    %v398 = vsub.s32 1, %v397
    %v399 = vrot.slane %v390, %v398
    %v402 = vadd.f32 %v384, %v395
    %v403 = vadd.f32 %v386, %v399
    %v404 = vmax.f32 %v402, 0.0
    %v405 = vmax.f32 %v403, 0.0
    %v406 = vpack.c.bf16 %v404, %v404
    %v407 = vpack.c.bf16 %v405, %v405
    %v408 = vld [vmem:[#allocation5] sm:$0xff]
    %v409 = vld [vmem:[#allocation5 + $0x8] sm:$0xff]
    %v410 = vld [vmem:[#allocation5 + $0x10] sm:$0xff]
    %v411 = vld [vmem:[#allocation5 + $0x18] sm:$0xff]
    %v412 = vld [vmem:[#allocation5 + $0x20] sm:$0xff]
    %v413 = vld [vmem:[#allocation5 + $0x28] sm:$0xff]
    %v414 = vld [vmem:[#allocation5 + $0x30] sm:$0xff]
    %v415 = vld [vmem:[#allocation5 + $0x38] sm:$0xff]
    %v416 = vld [vmem:[#allocation5 + $0x40] sm:$0xff]
    %v417 = vld [vmem:[#allocation5 + $0x48] sm:$0xff]
    %v418 = vld [vmem:[#allocation5 + $0x50] sm:$0xff]
    %v419 = vld [vmem:[#allocation5 + $0x58] sm:$0xff]
    %v420 = vld [vmem:[#allocation5 + $0x60] sm:$0xff]
    %v421 = vld [vmem:[#allocation5 + $0x68] sm:$0xff]
    %v422 = vld [vmem:[#allocation5 + $0x70] sm:$0xff]
    %v423 = vld [vmem:[#allocation5 + $0x78] sm:$0xff]
    %v424 = vld [vmem:[#allocation5 + $0x80] sm:$0xff]
    %v425 = vld [vmem:[#allocation5 + $0x88] sm:$0xff]
    %v426 = vld [vmem:[#allocation5 + $0x90] sm:$0xff]
    %v427 = vld [vmem:[#allocation5 + $0x98] sm:$0xff]
    %v428 = vld [vmem:[#allocation5 + $0xa0] sm:$0xff]
    %v429 = vld [vmem:[#allocation5 + $0xa8] sm:$0xff]
    %v430 = vld [vmem:[#allocation5 + $0xb0] sm:$0xff]
    %v431 = vld [vmem:[#allocation5 + $0xb8] sm:$0xff]
    %v432 = vld [vmem:[#allocation5 + $0xc0] sm:$0xff]
    %v433 = vld [vmem:[#allocation5 + $0xc8] sm:$0xff]
    %v434 = vld [vmem:[#allocation5 + $0xd0] sm:$0xff]
    %v435 = vld [vmem:[#allocation5 + $0xd8] sm:$0xff]
    %v436 = vld [vmem:[#allocation5 + $0xe0] sm:$0xff]
    %v437 = vld [vmem:[#allocation5 + $0xe8] sm:$0xff]
    %v438 = vld [vmem:[#allocation5 + $0xf0] sm:$0xff]
    %v439 = vld [vmem:[#allocation5 + $0xf8] sm:$0xff]
    %v440 = vld [vmem:[#allocation5 + $0x100] sm:$0xff]
    %v441 = vld [vmem:[#allocation5 + $0x108] sm:$0xff]
    %v442 = vld [vmem:[#allocation5 + $0x110] sm:$0xff]
    %v443 = vld [vmem:[#allocation5 + $0x118] sm:$0xff]
    %v444 = vld [vmem:[#allocation5 + $0x120] sm:$0xff]
    %v445 = vld [vmem:[#allocation5 + $0x128] sm:$0xff]
    %v446 = vld [vmem:[#allocation5 + $0x130] sm:$0xff]
    %v447 = vld [vmem:[#allocation5 + $0x138] sm:$0xff]
    %v448 = vld [vmem:[#allocation5 + $0x140] sm:$0xff]
    %v449 = vld [vmem:[#allocation5 + $0x148] sm:$0xff]
    %v450 = vld [vmem:[#allocation5 + $0x150] sm:$0xff]
    %v451 = vld [vmem:[#allocation5 + $0x158] sm:$0xff]
    %v452 = vld [vmem:[#allocation5 + $0x160] sm:$0xff]
    %v453 = vld [vmem:[#allocation5 + $0x168] sm:$0xff]
    %v454 = vld [vmem:[#allocation5 + $0x170] sm:$0xff]
    %v455 = vld [vmem:[#allocation5 + $0x178] sm:$0xff]
    %v456 = vld [vmem:[#allocation5 + $0x180] sm:$0xff]
    %v457 = vld [vmem:[#allocation5 + $0x188] sm:$0xff]
    %v458 = vld [vmem:[#allocation5 + $0x190] sm:$0xff]
    %v459 = vld [vmem:[#allocation5 + $0x198] sm:$0xff]
    %v460 = vld [vmem:[#allocation5 + $0x1a0] sm:$0xff]
    %v461 = vld [vmem:[#allocation5 + $0x1a8] sm:$0xff]
    %v462 = vld [vmem:[#allocation5 + $0x1b0] sm:$0xff]
    %v463 = vld [vmem:[#allocation5 + $0x1b8] sm:$0xff]
    %v464 = vld [vmem:[#allocation5 + $0x1c0] sm:$0xff]
    %v465 = vld [vmem:[#allocation5 + $0x1c8] sm:$0xff]
    %v466 = vld [vmem:[#allocation5 + $0x1d0] sm:$0xff]
    %v467 = vld [vmem:[#allocation5 + $0x1d8] sm:$0xff]
    %v468 = vld [vmem:[#allocation5 + $0x1e0] sm:$0xff]
    %v469 = vld [vmem:[#allocation5 + $0x1e8] sm:$0xff]
    %v470 = vld [vmem:[#allocation5 + $0x1f0] sm:$0xff]
    %v471 = vld [vmem:[#allocation5 + $0x1f8] sm:$0xff]
    %v472 = vld [vmem:[%s8] sm:$0xf]
    %v474 = vlaneseq
    %v475 = vshrl.u32 %v474, 7
    %v476 = vsub.s32 0, %v475
    %v477 = vrot.slane %v472, %v476
    %v478 = vlaneseq
    %v479 = vshrl.u32 %v478, 7
    %v480 = vsub.s32 1, %v479
    %v481 = vrot.slane %v472, %v480
    %v482 = vlaneseq
    %v483 = vshrl.u32 %v482, 7
    %v484 = vsub.s32 2, %v483
    %v485 = vrot.slane %v472, %v484
    %v486 = vlaneseq
    %v487 = vshrl.u32 %v486, 7
    %v488 = vsub.s32 3, %v487
    %v489 = vrot.slane %v472, %v488
    %v558 = vunpack.c.l.b16 %v408
    %v559 = vunpack.c.h.b16 %v408
    %v560 = vunpack.c.l.b16 %v409
    %v561 = vunpack.c.h.b16 %v409
    %v562 = vunpack.c.l.b16 %v410
    %v563 = vunpack.c.h.b16 %v410
    %v564 = vunpack.c.l.b16 %v411
    %v565 = vunpack.c.h.b16 %v411
    %v566 = vunpack.c.l.b16 %v412
    %v567 = vunpack.c.h.b16 %v412
    %v568 = vunpack.c.l.b16 %v413
    %v569 = vunpack.c.h.b16 %v413
    %v570 = vunpack.c.l.b16 %v414
    %v571 = vunpack.c.h.b16 %v414
    %v572 = vunpack.c.l.b16 %v415
    %v573 = vunpack.c.h.b16 %v415
    %v574 = vunpack.c.l.b16 %v416
    %v575 = vunpack.c.h.b16 %v416
    %v576 = vunpack.c.l.b16 %v417
    %v577 = vunpack.c.h.b16 %v417
    %v578 = vunpack.c.l.b16 %v418
    %v579 = vunpack.c.h.b16 %v418
    %v580 = vunpack.c.l.b16 %v419
    %v581 = vunpack.c.h.b16 %v419
    %v582 = vunpack.c.l.b16 %v420
    %v583 = vunpack.c.h.b16 %v420
    %v584 = vunpack.c.l.b16 %v421
    %v585 = vunpack.c.h.b16 %v421
    %v586 = vunpack.c.l.b16 %v422
    %v587 = vunpack.c.h.b16 %v422
    %v588 = vunpack.c.l.b16 %v423
    %v589 = vunpack.c.h.b16 %v423
    %v590 = vunpack.c.l.b16 %v424
    %v591 = vunpack.c.h.b16 %v424
    %v592 = vunpack.c.l.b16 %v425
    %v593 = vunpack.c.h.b16 %v425
    %v594 = vunpack.c.l.b16 %v426
    %v595 = vunpack.c.h.b16 %v426
    %v596 = vunpack.c.l.b16 %v427
    %v597 = vunpack.c.h.b16 %v427
    %v598 = vunpack.c.l.b16 %v428
    %v599 = vunpack.c.h.b16 %v428
    %v600 = vunpack.c.l.b16 %v429
    %v601 = vunpack.c.h.b16 %v429
    %v602 = vunpack.c.l.b16 %v430
    %v603 = vunpack.c.h.b16 %v430
    %v604 = vunpack.c.l.b16 %v431
    %v605 = vunpack.c.h.b16 %v431
    %v606 = vunpack.c.l.b16 %v432
    %v607 = vunpack.c.h.b16 %v432
    %v608 = vunpack.c.l.b16 %v433
    %v609 = vunpack.c.h.b16 %v433
    %v610 = vunpack.c.l.b16 %v434
    %v611 = vunpack.c.h.b16 %v434
    %v612 = vunpack.c.l.b16 %v435
    %v613 = vunpack.c.h.b16 %v435
    %v614 = vunpack.c.l.b16 %v436
    %v615 = vunpack.c.h.b16 %v436
    %v616 = vunpack.c.l.b16 %v437
    %v617 = vunpack.c.h.b16 %v437
    %v618 = vunpack.c.l.b16 %v438
    %v619 = vunpack.c.h.b16 %v438
    %v620 = vunpack.c.l.b16 %v439
    %v621 = vunpack.c.h.b16 %v439
    %v622 = vunpack.c.l.b16 %v440
    %v623 = vunpack.c.h.b16 %v440
    %v624 = vunpack.c.l.b16 %v441
    %v625 = vunpack.c.h.b16 %v441
    %v626 = vunpack.c.l.b16 %v442
    %v627 = vunpack.c.h.b16 %v442
    %v628 = vunpack.c.l.b16 %v443
    %v629 = vunpack.c.h.b16 %v443
    %v630 = vunpack.c.l.b16 %v444
    %v631 = vunpack.c.h.b16 %v444
    %v632 = vunpack.c.l.b16 %v445
    %v633 = vunpack.c.h.b16 %v445
    %v634 = vunpack.c.l.b16 %v446
    %v635 = vunpack.c.h.b16 %v446
    %v636 = vunpack.c.l.b16 %v447
    %v637 = vunpack.c.h.b16 %v447
    %v638 = vunpack.c.l.b16 %v448
    %v639 = vunpack.c.h.b16 %v448
    %v640 = vunpack.c.l.b16 %v449
    %v641 = vunpack.c.h.b16 %v449
    %v642 = vunpack.c.l.b16 %v450
    %v643 = vunpack.c.h.b16 %v450
    %v644 = vunpack.c.l.b16 %v451
    %v645 = vunpack.c.h.b16 %v451
    %v646 = vunpack.c.l.b16 %v452
    %v647 = vunpack.c.h.b16 %v452
    %v648 = vunpack.c.l.b16 %v453
    %v649 = vunpack.c.h.b16 %v453
    %v650 = vunpack.c.l.b16 %v454
    %v651 = vunpack.c.h.b16 %v454
    %v652 = vunpack.c.l.b16 %v455
    %v653 = vunpack.c.h.b16 %v455
    %v654 = vunpack.c.l.b16 %v456
    %v655 = vunpack.c.h.b16 %v456
    %v656 = vunpack.c.l.b16 %v457
    %v657 = vunpack.c.h.b16 %v457
    %v658 = vunpack.c.l.b16 %v458
    %v659 = vunpack.c.h.b16 %v458
    %v660 = vunpack.c.l.b16 %v459
    %v661 = vunpack.c.h.b16 %v459
    %v662 = vunpack.c.l.b16 %v460
    %v663 = vunpack.c.h.b16 %v460
    %v664 = vunpack.c.l.b16 %v461
    %v665 = vunpack.c.h.b16 %v461
    %v666 = vunpack.c.l.b16 %v462
    %v667 = vunpack.c.h.b16 %v462
    %v668 = vunpack.c.l.b16 %v463
    %v669 = vunpack.c.h.b16 %v463
    %v670 = vunpack.c.l.b16 %v464
    %v671 = vunpack.c.h.b16 %v464
    %v672 = vunpack.c.l.b16 %v465
    %v673 = vunpack.c.h.b16 %v465
    %v674 = vunpack.c.l.b16 %v466
    %v675 = vunpack.c.h.b16 %v466
    %v676 = vunpack.c.l.b16 %v467
    %v677 = vunpack.c.h.b16 %v467
    %v678 = vunpack.c.l.b16 %v468
    %v679 = vunpack.c.h.b16 %v468
    %v680 = vunpack.c.l.b16 %v469
    %v681 = vunpack.c.h.b16 %v469
    %v682 = vunpack.c.l.b16 %v470
    %v683 = vunpack.c.h.b16 %v470
    %v684 = vunpack.c.l.b16 %v471
    %v685 = vunpack.c.h.b16 %v471
    %v686 = vpack.c.b16 %v562, %v558
    %v687 = vpack.c.b16 %v563, %v559
    %v688 = vpack.c.b16 %v564, %v560
    %v689 = vpack.c.b16 %v565, %v561
    %v690 = vpack.c.b16 %v570, %v566
    %v691 = vpack.c.b16 %v571, %v567
    %v692 = vpack.c.b16 %v572, %v568
    %v693 = vpack.c.b16 %v573, %v569
    %v694 = vpack.c.b16 %v578, %v574
    %v695 = vpack.c.b16 %v579, %v575
    %v696 = vpack.c.b16 %v580, %v576
    %v697 = vpack.c.b16 %v581, %v577
    %v698 = vpack.c.b16 %v586, %v582
    %v699 = vpack.c.b16 %v587, %v583
    %v700 = vpack.c.b16 %v588, %v584
    %v701 = vpack.c.b16 %v589, %v585
    %v702 = vpack.c.b16 %v594, %v590
    %v703 = vpack.c.b16 %v595, %v591
    %v704 = vpack.c.b16 %v596, %v592
    %v705 = vpack.c.b16 %v597, %v593
    %v706 = vpack.c.b16 %v602, %v598
    %v707 = vpack.c.b16 %v603, %v599
    %v708 = vpack.c.b16 %v604, %v600
    %v709 = vpack.c.b16 %v605, %v601
    %v710 = vpack.c.b16 %v610, %v606
    %v711 = vpack.c.b16 %v611, %v607
    %v712 = vpack.c.b16 %v612, %v608
    %v713 = vpack.c.b16 %v613, %v609
    %v714 = vpack.c.b16 %v618, %v614
    %v715 = vpack.c.b16 %v619, %v615
    %v716 = vpack.c.b16 %v620, %v616
    %v717 = vpack.c.b16 %v621, %v617
    %v718 = vpack.c.b16 %v626, %v622
    %v719 = vpack.c.b16 %v627, %v623
    %v720 = vpack.c.b16 %v628, %v624
    %v721 = vpack.c.b16 %v629, %v625
    %v722 = vpack.c.b16 %v634, %v630
    %v723 = vpack.c.b16 %v635, %v631
    %v724 = vpack.c.b16 %v636, %v632
    %v725 = vpack.c.b16 %v637, %v633
    %v726 = vpack.c.b16 %v642, %v638
    %v727 = vpack.c.b16 %v643, %v639
    %v728 = vpack.c.b16 %v644, %v640
    %v729 = vpack.c.b16 %v645, %v641
    %v730 = vpack.c.b16 %v650, %v646
    %v731 = vpack.c.b16 %v651, %v647
    %v732 = vpack.c.b16 %v652, %v648
    %v733 = vpack.c.b16 %v653, %v649
    %v734 = vpack.c.b16 %v658, %v654
    %v735 = vpack.c.b16 %v659, %v655
    %v736 = vpack.c.b16 %v660, %v656
    %v737 = vpack.c.b16 %v661, %v657
    %v738 = vpack.c.b16 %v666, %v662
    %v739 = vpack.c.b16 %v667, %v663
    %v740 = vpack.c.b16 %v668, %v664
    %v741 = vpack.c.b16 %v669, %v665
    %v742 = vpack.c.b16 %v674, %v670
    %v743 = vpack.c.b16 %v675, %v671
    %v744 = vpack.c.b16 %v676, %v672
    %v745 = vpack.c.b16 %v677, %v673
    %v746 = vpack.c.b16 %v682, %v678
    %v747 = vpack.c.b16 %v683, %v679
    %v748 = vpack.c.b16 %v684, %v680
    %v749 = vpack.c.b16 %v685, %v681
    %814 = vmatprep.subr.bf16.mxu0 %v687
    %815 = vmatpush1.bf16.msra.mxu0 %v686
    %816 = vmatprep.subr.bf16.mxu0 %v691
    %817 = vmatpush1.bf16.msra.mxu0 %v690
    %818 = vmatprep.subr.bf16.mxu0 %v695
    %819 = vmatpush1.bf16.msra.mxu0 %v694
    %820 = vmatprep.subr.bf16.mxu0 %v699
    %821 = vmatpush1.bf16.msra.mxu0 %v698
    %822 = vmatprep.subr.bf16.mxu0 %v703
    %823 = vmatpush1.bf16.msra.mxu0 %v702
    %824 = vmatprep.subr.bf16.mxu0 %v707
    %825 = vmatpush1.bf16.msra.mxu0 %v706
    %826 = vmatprep.subr.bf16.mxu0 %v711
    %827 = vmatpush1.bf16.msra.mxu0 %v710
    %828 = vmatprep.subr.bf16.mxu0 %v715
    %829 = vmatpush1.bf16.msra.mxu0 %v714
    %830 = vmatprep.subr.bf16.mxu0 %v719
    %831 = vmatpush1.bf16.msra.mxu0 %v718
    %832 = vmatprep.subr.bf16.mxu0 %v723
    %833 = vmatpush1.bf16.msra.mxu0 %v722
    %834 = vmatprep.subr.bf16.mxu0 %v727
    %835 = vmatpush1.bf16.msra.mxu0 %v726
    %836 = vmatprep.subr.bf16.mxu0 %v731
    %837 = vmatpush1.bf16.msra.mxu0 %v730
    %838 = vmatprep.subr.bf16.mxu0 %v735
    %839 = vmatpush1.bf16.msra.mxu0 %v734
    %840 = vmatprep.subr.bf16.mxu0 %v739
    %841 = vmatpush1.bf16.msra.mxu0 %v738
    %842 = vmatprep.subr.bf16.mxu0 %v743
    %843 = vmatpush1.bf16.msra.mxu0 %v742
    %844 = vmatprep.subr.bf16.mxu0 %v747
    %845 = vmatpush1.bf16.msra.mxu0 %v746
    %846 = vmatprep.mubr.bf16.mxu0 %v407
    %847 = vmatmul.mubr.bf16.gmra.mrb[0].mxu0 %v406
    %v848 = vpop.f32.mrb[0].mxu0
    %v849 = vadd.f32 %v477, %v848
    %v850 = vpop.f32.mrb[0].mxu0
    %v851 = vadd.f32 %v481, %v850
    %v852 = vpop.f32.mrb[0].mxu0
    %v853 = vpop.f32.mrb[0].mxu0
    %854 = vdwg.mxu0
    %855 = vmatprep.subr.bf16.mxu0 %v689
    %856 = vmatpush1.bf16.msra.mxu0 %v688
    %857 = vmatprep.subr.bf16.mxu0 %v693
    %858 = vmatpush1.bf16.msra.mxu0 %v692
    %859 = vmatprep.subr.bf16.mxu0 %v697
    %860 = vmatpush1.bf16.msra.mxu0 %v696
    %861 = vmatprep.subr.bf16.mxu0 %v701
    %862 = vmatpush1.bf16.msra.mxu0 %v700
    %863 = vmatprep.subr.bf16.mxu0 %v705
    %864 = vmatpush1.bf16.msra.mxu0 %v704
    %865 = vmatprep.subr.bf16.mxu0 %v709
    %866 = vmatpush1.bf16.msra.mxu0 %v708
    %867 = vmatprep.subr.bf16.mxu0 %v713
    %868 = vmatpush1.bf16.msra.mxu0 %v712
    %869 = vmatprep.subr.bf16.mxu0 %v717
    %870 = vmatpush1.bf16.msra.mxu0 %v716
    %871 = vmatprep.subr.bf16.mxu0 %v721
    %872 = vmatpush1.bf16.msra.mxu0 %v720
    %873 = vmatprep.subr.bf16.mxu0 %v725
    %874 = vmatpush1.bf16.msra.mxu0 %v724
    %875 = vmatprep.subr.bf16.mxu0 %v729
    %876 = vmatpush1.bf16.msra.mxu0 %v728
    %877 = vmatprep.subr.bf16.mxu0 %v733
    %878 = vmatpush1.bf16.msra.mxu0 %v732
    %879 = vmatprep.subr.bf16.mxu0 %v737
    %880 = vmatpush1.bf16.msra.mxu0 %v736
    %881 = vmatprep.subr.bf16.mxu0 %v741
    %882 = vmatpush1.bf16.msra.mxu0 %v740
    %883 = vmatprep.subr.bf16.mxu0 %v745
    %884 = vmatpush1.bf16.msra.mxu0 %v744
    %885 = vmatprep.subr.bf16.mxu0 %v749
    %886 = vmatpush1.bf16.msra.mxu0 %v748
    %887 = vmatprep.mubr.bf16.mxu0 %v407
    %888 = vmatmul.mubr.bf16.gmra.mrb[0].mxu0 %v406
    %v889 = vpop.f32.mrb[0].mxu0
    %v890 = vadd.f32 %v485, %v889
    %v891 = vpop.f32.mrb[0].mxu0
    %v892 = vadd.f32 %v489, %v891
    %v893 = vpop.f32.mrb[0].mxu0
    %v894 = vpop.f32.mrb[0].mxu0
    %895 = vdwg.mxu0
    %v896 = vmax.f32 %v849, 0.0
    %v897 = vmax.f32 %v851, 0.0
    %v898 = vmax.f32 %v890, 0.0
    %v899 = vmax.f32 %v892, 0.0
    %v900 = vpack.c.bf16 %v896, %v896
    %v901 = vpack.c.bf16 %v897, %v897
    %v902 = vpack.c.bf16 %v898, %v898
    %v903 = vpack.c.bf16 %v899, %v899
    %v904 = vld [vmem:[#allocation7] sm:$0xff]
    %v905 = vld [vmem:[#allocation7 + $0x8] sm:$0xff]
    %v906 = vld [vmem:[#allocation7 + $0x10] sm:$0xff]
    %v907 = vld [vmem:[#allocation7 + $0x18] sm:$0xff]
    %v908 = vld [vmem:[#allocation7 + $0x20] sm:$0xff]
    %v909 = vld [vmem:[#allocation7 + $0x28] sm:$0xff]
    %v910 = vld [vmem:[#allocation7 + $0x30] sm:$0xff]
    %v911 = vld [vmem:[#allocation7 + $0x38] sm:$0xff]
    %v912 = vld [vmem:[#allocation7 + $0x40] sm:$0xff]
    %v913 = vld [vmem:[#allocation7 + $0x48] sm:$0xff]
    %v914 = vld [vmem:[#allocation7 + $0x50] sm:$0xff]
    %v915 = vld [vmem:[#allocation7 + $0x58] sm:$0xff]
    %v916 = vld [vmem:[#allocation7 + $0x60] sm:$0xff]
    %v917 = vld [vmem:[#allocation7 + $0x68] sm:$0xff]
    %v918 = vld [vmem:[#allocation7 + $0x70] sm:$0xff]
    %v919 = vld [vmem:[#allocation7 + $0x78] sm:$0xff]
    %v920 = vld [vmem:[#allocation7 + $0x80] sm:$0xff]
    %v921 = vld [vmem:[#allocation7 + $0x88] sm:$0xff]
    %v922 = vld [vmem:[#allocation7 + $0x90] sm:$0xff]
    %v923 = vld [vmem:[#allocation7 + $0x98] sm:$0xff]
    %v924 = vld [vmem:[#allocation7 + $0xa0] sm:$0xff]
    %v925 = vld [vmem:[#allocation7 + $0xa8] sm:$0xff]
    %v926 = vld [vmem:[#allocation7 + $0xb0] sm:$0xff]
    %v927 = vld [vmem:[#allocation7 + $0xb8] sm:$0xff]
    %v928 = vld [vmem:[#allocation7 + $0xc0] sm:$0xff]
    %v929 = vld [vmem:[#allocation7 + $0xc8] sm:$0xff]
    %v930 = vld [vmem:[#allocation7 + $0xd0] sm:$0xff]
    %v931 = vld [vmem:[#allocation7 + $0xd8] sm:$0xff]
    %v932 = vld [vmem:[#allocation7 + $0xe0] sm:$0xff]
    %v933 = vld [vmem:[#allocation7 + $0xe8] sm:$0xff]
    %v934 = vld [vmem:[#allocation7 + $0xf0] sm:$0xff]
    %v935 = vld [vmem:[#allocation7 + $0xf8] sm:$0xff]
    %v936 = vld [vmem:[#allocation7 + $0x100] sm:$0xff]
    %v937 = vld [vmem:[#allocation7 + $0x108] sm:$0xff]
    %v938 = vld [vmem:[#allocation7 + $0x110] sm:$0xff]
    %v939 = vld [vmem:[#allocation7 + $0x118] sm:$0xff]
    %v940 = vld [vmem:[#allocation7 + $0x120] sm:$0xff]
    %v941 = vld [vmem:[#allocation7 + $0x128] sm:$0xff]
    %v942 = vld [vmem:[#allocation7 + $0x130] sm:$0xff]
    %v943 = vld [vmem:[#allocation7 + $0x138] sm:$0xff]
    %v944 = vld [vmem:[#allocation7 + $0x140] sm:$0xff]
    %v945 = vld [vmem:[#allocation7 + $0x148] sm:$0xff]
    %v946 = vld [vmem:[#allocation7 + $0x150] sm:$0xff]
    %v947 = vld [vmem:[#allocation7 + $0x158] sm:$0xff]
    %v948 = vld [vmem:[#allocation7 + $0x160] sm:$0xff]
    %v949 = vld [vmem:[#allocation7 + $0x168] sm:$0xff]
    %v950 = vld [vmem:[#allocation7 + $0x170] sm:$0xff]
    %v951 = vld [vmem:[#allocation7 + $0x178] sm:$0xff]
    %v952 = vld [vmem:[#allocation7 + $0x180] sm:$0xff]
    %v953 = vld [vmem:[#allocation7 + $0x188] sm:$0xff]
    %v954 = vld [vmem:[#allocation7 + $0x190] sm:$0xff]
    %v955 = vld [vmem:[#allocation7 + $0x198] sm:$0xff]
    %v956 = vld [vmem:[#allocation7 + $0x1a0] sm:$0xff]
    %v957 = vld [vmem:[#allocation7 + $0x1a8] sm:$0xff]
    %v958 = vld [vmem:[#allocation7 + $0x1b0] sm:$0xff]
    %v959 = vld [vmem:[#allocation7 + $0x1b8] sm:$0xff]
    %v960 = vld [vmem:[#allocation7 + $0x1c0] sm:$0xff]
    %v961 = vld [vmem:[#allocation7 + $0x1c8] sm:$0xff]
    %v962 = vld [vmem:[#allocation7 + $0x1d0] sm:$0xff]
    %v963 = vld [vmem:[#allocation7 + $0x1d8] sm:$0xff]
    %v964 = vld [vmem:[#allocation7 + $0x1e0] sm:$0xff]
    %v965 = vld [vmem:[#allocation7 + $0x1e8] sm:$0xff]
    %v966 = vld [vmem:[#allocation7 + $0x1f0] sm:$0xff]
    %v967 = vld [vmem:[#allocation7 + $0x1f8] sm:$0xff]
    %v968 = vld [vmem:[%s10] sm:$0x3]
    %v970 = vlaneseq
    %v971 = vshrl.u32 %v970, 7
    %v972 = vsub.s32 0, %v971
    %v973 = vrot.slane %v968, %v972
    %v974 = vlaneseq
    %v975 = vshrl.u32 %v974, 7
    %v976 = vsub.s32 1, %v975
    %v977 = vrot.slane %v968, %v976
    %v1044 = vunpack.c.l.b16 %v904
    %v1045 = vunpack.c.h.b16 %v904
    %v1046 = vunpack.c.l.b16 %v905
    %v1047 = vunpack.c.h.b16 %v905
    %v1048 = vunpack.c.l.b16 %v906
    %v1049 = vunpack.c.h.b16 %v906
    %v1050 = vunpack.c.l.b16 %v907
    %v1051 = vunpack.c.h.b16 %v907
    %v1052 = vunpack.c.l.b16 %v908
    %v1053 = vunpack.c.h.b16 %v908
    %v1054 = vunpack.c.l.b16 %v909
    %v1055 = vunpack.c.h.b16 %v909
    %v1056 = vunpack.c.l.b16 %v910
    %v1057 = vunpack.c.h.b16 %v910
    %v1058 = vunpack.c.l.b16 %v911
    %v1059 = vunpack.c.h.b16 %v911
    %v1060 = vunpack.c.l.b16 %v912
    %v1061 = vunpack.c.h.b16 %v912
    %v1062 = vunpack.c.l.b16 %v913
    %v1063 = vunpack.c.h.b16 %v913
    %v1064 = vunpack.c.l.b16 %v914
    %v1065 = vunpack.c.h.b16 %v914
    %v1066 = vunpack.c.l.b16 %v915
    %v1067 = vunpack.c.h.b16 %v915
    %v1068 = vunpack.c.l.b16 %v916
    %v1069 = vunpack.c.h.b16 %v916
    %v1070 = vunpack.c.l.b16 %v917
    %v1071 = vunpack.c.h.b16 %v917
    %v1072 = vunpack.c.l.b16 %v918
    %v1073 = vunpack.c.h.b16 %v918
    %v1074 = vunpack.c.l.b16 %v919
    %v1075 = vunpack.c.h.b16 %v919
    %v1076 = vunpack.c.l.b16 %v920
    %v1077 = vunpack.c.h.b16 %v920
    %v1078 = vunpack.c.l.b16 %v921
    %v1079 = vunpack.c.h.b16 %v921
    %v1080 = vunpack.c.l.b16 %v922
    %v1081 = vunpack.c.h.b16 %v922
    %v1082 = vunpack.c.l.b16 %v923
    %v1083 = vunpack.c.h.b16 %v923
    %v1084 = vunpack.c.l.b16 %v924
    %v1085 = vunpack.c.h.b16 %v924
    %v1086 = vunpack.c.l.b16 %v925
    %v1087 = vunpack.c.h.b16 %v925
    %v1088 = vunpack.c.l.b16 %v926
    %v1089 = vunpack.c.h.b16 %v926
    %v1090 = vunpack.c.l.b16 %v927
    %v1091 = vunpack.c.h.b16 %v927
    %v1092 = vunpack.c.l.b16 %v928
    %v1093 = vunpack.c.h.b16 %v928
    %v1094 = vunpack.c.l.b16 %v929
    %v1095 = vunpack.c.h.b16 %v929
    %v1096 = vunpack.c.l.b16 %v930
    %v1097 = vunpack.c.h.b16 %v930
    %v1098 = vunpack.c.l.b16 %v931
    %v1099 = vunpack.c.h.b16 %v931
    %v1100 = vunpack.c.l.b16 %v932
    %v1101 = vunpack.c.h.b16 %v932
    %v1102 = vunpack.c.l.b16 %v933
    %v1103 = vunpack.c.h.b16 %v933
    %v1104 = vunpack.c.l.b16 %v934
    %v1105 = vunpack.c.h.b16 %v934
    %v1106 = vunpack.c.l.b16 %v935
    %v1107 = vunpack.c.h.b16 %v935
    %v1108 = vunpack.c.l.b16 %v936
    %v1109 = vunpack.c.h.b16 %v936
    %v1110 = vunpack.c.l.b16 %v937
    %v1111 = vunpack.c.h.b16 %v937
    %v1112 = vunpack.c.l.b16 %v938
    %v1113 = vunpack.c.h.b16 %v938
    %v1114 = vunpack.c.l.b16 %v939
    %v1115 = vunpack.c.h.b16 %v939
    %v1116 = vunpack.c.l.b16 %v940
    %v1117 = vunpack.c.h.b16 %v940
    %v1118 = vunpack.c.l.b16 %v941
    %v1119 = vunpack.c.h.b16 %v941
    %v1120 = vunpack.c.l.b16 %v942
    %v1121 = vunpack.c.h.b16 %v942
    %v1122 = vunpack.c.l.b16 %v943
    %v1123 = vunpack.c.h.b16 %v943
    %v1124 = vunpack.c.l.b16 %v944
    %v1125 = vunpack.c.h.b16 %v944
    %v1126 = vunpack.c.l.b16 %v945
    %v1127 = vunpack.c.h.b16 %v945
    %v1128 = vunpack.c.l.b16 %v946
    %v1129 = vunpack.c.h.b16 %v946
    %v1130 = vunpack.c.l.b16 %v947
    %v1131 = vunpack.c.h.b16 %v947
    %v1132 = vunpack.c.l.b16 %v948
    %v1133 = vunpack.c.h.b16 %v948
    %v1134 = vunpack.c.l.b16 %v949
    %v1135 = vunpack.c.h.b16 %v949
    %v1136 = vunpack.c.l.b16 %v950
    %v1137 = vunpack.c.h.b16 %v950
    %v1138 = vunpack.c.l.b16 %v951
    %v1139 = vunpack.c.h.b16 %v951
    %v1140 = vunpack.c.l.b16 %v952
    %v1141 = vunpack.c.h.b16 %v952
    %v1142 = vunpack.c.l.b16 %v953
    %v1143 = vunpack.c.h.b16 %v953
    %v1144 = vunpack.c.l.b16 %v954
    %v1145 = vunpack.c.h.b16 %v954
    %v1146 = vunpack.c.l.b16 %v955
    %v1147 = vunpack.c.h.b16 %v955
    %v1148 = vunpack.c.l.b16 %v956
    %v1149 = vunpack.c.h.b16 %v956
    %v1150 = vunpack.c.l.b16 %v957
    %v1151 = vunpack.c.h.b16 %v957
    %v1152 = vunpack.c.l.b16 %v958
    %v1153 = vunpack.c.h.b16 %v958
    %v1154 = vunpack.c.l.b16 %v959
    %v1155 = vunpack.c.h.b16 %v959
    %v1156 = vunpack.c.l.b16 %v960
    %v1157 = vunpack.c.h.b16 %v960
    %v1158 = vunpack.c.l.b16 %v961
    %v1159 = vunpack.c.h.b16 %v961
    %v1160 = vunpack.c.l.b16 %v962
    %v1161 = vunpack.c.h.b16 %v962
    %v1162 = vunpack.c.l.b16 %v963
    %v1163 = vunpack.c.h.b16 %v963
    %v1164 = vunpack.c.l.b16 %v964
    %v1165 = vunpack.c.h.b16 %v964
    %v1166 = vunpack.c.l.b16 %v965
    %v1167 = vunpack.c.h.b16 %v965
    %v1168 = vunpack.c.l.b16 %v966
    %v1169 = vunpack.c.h.b16 %v966
    %v1170 = vunpack.c.l.b16 %v967
    %v1171 = vunpack.c.h.b16 %v967
    %v1172 = vpack.c.b16 %v1046, %v1044
    %v1173 = vpack.c.b16 %v1047, %v1045
    %v1174 = vpack.c.b16 %v1050, %v1048
    %v1175 = vpack.c.b16 %v1051, %v1049
    %v1176 = vpack.c.b16 %v1054, %v1052
    %v1177 = vpack.c.b16 %v1055, %v1053
    %v1178 = vpack.c.b16 %v1058, %v1056
    %v1179 = vpack.c.b16 %v1059, %v1057
    %v1180 = vpack.c.b16 %v1062, %v1060
    %v1181 = vpack.c.b16 %v1063, %v1061
    %v1182 = vpack.c.b16 %v1066, %v1064
    %v1183 = vpack.c.b16 %v1067, %v1065
    %v1184 = vpack.c.b16 %v1070, %v1068
    %v1185 = vpack.c.b16 %v1071, %v1069
    %v1186 = vpack.c.b16 %v1074, %v1072
    %v1187 = vpack.c.b16 %v1075, %v1073
    %v1188 = vpack.c.b16 %v1078, %v1076
    %v1189 = vpack.c.b16 %v1079, %v1077
    %v1190 = vpack.c.b16 %v1082, %v1080
    %v1191 = vpack.c.b16 %v1083, %v1081
    %v1192 = vpack.c.b16 %v1086, %v1084
    %v1193 = vpack.c.b16 %v1087, %v1085
    %v1194 = vpack.c.b16 %v1090, %v1088
    %v1195 = vpack.c.b16 %v1091, %v1089
    %v1196 = vpack.c.b16 %v1094, %v1092
    %v1197 = vpack.c.b16 %v1095, %v1093
    %v1198 = vpack.c.b16 %v1098, %v1096
    %v1199 = vpack.c.b16 %v1099, %v1097
    %v1200 = vpack.c.b16 %v1102, %v1100
    %v1201 = vpack.c.b16 %v1103, %v1101
    %v1202 = vpack.c.b16 %v1106, %v1104
    %v1203 = vpack.c.b16 %v1107, %v1105
    %v1204 = vpack.c.b16 %v1110, %v1108
    %v1205 = vpack.c.b16 %v1111, %v1109
    %v1206 = vpack.c.b16 %v1114, %v1112
    %v1207 = vpack.c.b16 %v1115, %v1113
    %v1208 = vpack.c.b16 %v1118, %v1116
    %v1209 = vpack.c.b16 %v1119, %v1117
    %v1210 = vpack.c.b16 %v1122, %v1120
    %v1211 = vpack.c.b16 %v1123, %v1121
    %v1212 = vpack.c.b16 %v1126, %v1124
    %v1213 = vpack.c.b16 %v1127, %v1125
    %v1214 = vpack.c.b16 %v1130, %v1128
    %v1215 = vpack.c.b16 %v1131, %v1129
    %v1216 = vpack.c.b16 %v1134, %v1132
    %v1217 = vpack.c.b16 %v1135, %v1133
    %v1218 = vpack.c.b16 %v1138, %v1136
    %v1219 = vpack.c.b16 %v1139, %v1137
    %v1220 = vpack.c.b16 %v1142, %v1140
    %v1221 = vpack.c.b16 %v1143, %v1141
    %v1222 = vpack.c.b16 %v1146, %v1144
    %v1223 = vpack.c.b16 %v1147, %v1145
    %v1224 = vpack.c.b16 %v1150, %v1148
    %v1225 = vpack.c.b16 %v1151, %v1149
    %v1226 = vpack.c.b16 %v1154, %v1152
    %v1227 = vpack.c.b16 %v1155, %v1153
    %v1228 = vpack.c.b16 %v1158, %v1156
    %v1229 = vpack.c.b16 %v1159, %v1157
    %v1230 = vpack.c.b16 %v1162, %v1160
    %v1231 = vpack.c.b16 %v1163, %v1161
    %v1232 = vpack.c.b16 %v1166, %v1164
    %v1233 = vpack.c.b16 %v1167, %v1165
    %v1234 = vpack.c.b16 %v1170, %v1168
    %v1235 = vpack.c.b16 %v1171, %v1169
    %1300 = vmatprep.subr.bf16.mxu0 %v1173
    %1301 = vmatpush1.bf16.msra.mxu0 %v1172
    %1302 = vmatprep.subr.bf16.mxu0 %v1175
    %1303 = vmatpush1.bf16.msra.mxu0 %v1174
    %1304 = vmatprep.subr.bf16.mxu0 %v1177
    %1305 = vmatpush1.bf16.msra.mxu0 %v1176
    %1306 = vmatprep.subr.bf16.mxu0 %v1179
    %1307 = vmatpush1.bf16.msra.mxu0 %v1178
    %1308 = vmatprep.subr.bf16.mxu0 %v1181
    %1309 = vmatpush1.bf16.msra.mxu0 %v1180
    %1310 = vmatprep.subr.bf16.mxu0 %v1183
    %1311 = vmatpush1.bf16.msra.mxu0 %v1182
    %1312 = vmatprep.subr.bf16.mxu0 %v1185
    %1313 = vmatpush1.bf16.msra.mxu0 %v1184
    %1314 = vmatprep.subr.bf16.mxu0 %v1187
    %1315 = vmatpush1.bf16.msra.mxu0 %v1186
    %1316 = vmatprep.subr.bf16.mxu0 %v1189
    %1317 = vmatpush1.bf16.msra.mxu0 %v1188
    %1318 = vmatprep.subr.bf16.mxu0 %v1191
    %1319 = vmatpush1.bf16.msra.mxu0 %v1190
    %1320 = vmatprep.subr.bf16.mxu0 %v1193
    %1321 = vmatpush1.bf16.msra.mxu0 %v1192
    %1322 = vmatprep.subr.bf16.mxu0 %v1195
    %1323 = vmatpush1.bf16.msra.mxu0 %v1194
    %1324 = vmatprep.subr.bf16.mxu0 %v1197
    %1325 = vmatpush1.bf16.msra.mxu0 %v1196
    %1326 = vmatprep.subr.bf16.mxu0 %v1199
    %1327 = vmatpush1.bf16.msra.mxu0 %v1198
    %1328 = vmatprep.subr.bf16.mxu0 %v1201
    %1329 = vmatpush1.bf16.msra.mxu0 %v1200
    %1330 = vmatprep.subr.bf16.mxu0 %v1203
    %1331 = vmatpush1.bf16.msra.mxu0 %v1202
    %1332 = vmatprep.mubr.bf16.mxu0 %v901
    %1333 = vmatmul.mubr.bf16.gmra.mrb[0].mxu0 %v900
    %v1334 = vpop.f32.mrb[0].mxu0
    %v1335 = vadd.f32 %v973, %v1334
    %v1336 = vpop.f32.mrb[0].mxu0
    %v1337 = vadd.f32 %v977, %v1336
    %v1338 = vpop.f32.mrb[0].mxu0
    %v1339 = vpop.f32.mrb[0].mxu0
    %1340 = vdwg.mxu0
    %1341 = vmatprep.subr.bf16.mxu0 %v1205
    %1342 = vmatpush1.bf16.msra.mxu0 %v1204
    %1343 = vmatprep.subr.bf16.mxu0 %v1207
    %1344 = vmatpush1.bf16.msra.mxu0 %v1206
    %1345 = vmatprep.subr.bf16.mxu0 %v1209
    %1346 = vmatpush1.bf16.msra.mxu0 %v1208
    %1347 = vmatprep.subr.bf16.mxu0 %v1211
    %1348 = vmatpush1.bf16.msra.mxu0 %v1210
    %1349 = vmatprep.subr.bf16.mxu0 %v1213
    %1350 = vmatpush1.bf16.msra.mxu0 %v1212
    %1351 = vmatprep.subr.bf16.mxu0 %v1215
    %1352 = vmatpush1.bf16.msra.mxu0 %v1214
    %1353 = vmatprep.subr.bf16.mxu0 %v1217
    %1354 = vmatpush1.bf16.msra.mxu0 %v1216
    %1355 = vmatprep.subr.bf16.mxu0 %v1219
    %1356 = vmatpush1.bf16.msra.mxu0 %v1218
    %1357 = vmatprep.subr.bf16.mxu0 %v1221
    %1358 = vmatpush1.bf16.msra.mxu0 %v1220
    %1359 = vmatprep.subr.bf16.mxu0 %v1223
    %1360 = vmatpush1.bf16.msra.mxu0 %v1222
    %1361 = vmatprep.subr.bf16.mxu0 %v1225
    %1362 = vmatpush1.bf16.msra.mxu0 %v1224
    %1363 = vmatprep.subr.bf16.mxu0 %v1227
    %1364 = vmatpush1.bf16.msra.mxu0 %v1226
    %1365 = vmatprep.subr.bf16.mxu0 %v1229
    %1366 = vmatpush1.bf16.msra.mxu0 %v1228
    %1367 = vmatprep.subr.bf16.mxu0 %v1231
    %1368 = vmatpush1.bf16.msra.mxu0 %v1230
    %1369 = vmatprep.subr.bf16.mxu0 %v1233
    %1370 = vmatpush1.bf16.msra.mxu0 %v1232
    %1371 = vmatprep.subr.bf16.mxu0 %v1235
    %1372 = vmatpush1.bf16.msra.mxu0 %v1234
    %1373 = vmatprep.mubr.bf16.mxu0 %v903
    %1374 = vmatmul.mubr.bf16.gmra.mrb[0].mxu0 %v902
    %v1375 = vpop.f32.mrb[0].mxu0
    %v1376 = vadd.f32 %v1335, %v1375
    %v1377 = vpop.f32.mrb[0].mxu0
    %v1378 = vadd.f32 %v1337, %v1377
    %v1379 = vpop.f32.mrb[0].mxu0
    %v1380 = vpop.f32.mrb[0].mxu0
    %1381 = vdwg.mxu0
    %v1382 = vmax.f32 %v1376, 0.0
    %v1383 = vmax.f32 %v1378, 0.0
    %v1384 = vpack.c.bf16 %v1382, %v1382
    %v1385 = vpack.c.bf16 %v1383, %v1383
    %v1386 = vld [vmem:[#allocation8] sm:$0xf]
    %v1387 = vld [vmem:[#allocation8 + $0x4] sm:$0xf]
    %v1388 = vld [vmem:[#allocation8 + $0x8] sm:$0xf]
    %v1389 = vld [vmem:[#allocation8 + $0xc] sm:$0xf]
    %v1390 = vld [vmem:[#allocation8 + $0x10] sm:$0xf]
    %v1391 = vld [vmem:[#allocation8 + $0x14] sm:$0xf]
    %v1392 = vld [vmem:[#allocation8 + $0x18] sm:$0xf]
    %v1393 = vld [vmem:[#allocation8 + $0x1c] sm:$0xf]
    %v1394 = vld [vmem:[#allocation8 + $0x20] sm:$0xf]
    %v1395 = vld [vmem:[#allocation8 + $0x24] sm:$0xf]
    %v1396 = vld [vmem:[#allocation8 + $0x28] sm:$0xf]
    %v1397 = vld [vmem:[#allocation8 + $0x2c] sm:$0xf]
    %v1398 = vld [vmem:[#allocation8 + $0x30] sm:$0xf]
    %v1399 = vld [vmem:[#allocation8 + $0x34] sm:$0xf]
    %v1400 = vld [vmem:[#allocation8 + $0x38] sm:$0xf]
    %v1401 = vld [vmem:[#allocation8 + $0x3c] sm:$0xf]
    %v1402 = vld [vmem:[#allocation8 + $0x40] sm:$0xf]
    %v1403 = vld [vmem:[#allocation8 + $0x44] sm:$0xf]
    %v1404 = vld [vmem:[#allocation8 + $0x48] sm:$0xf]
    %v1405 = vld [vmem:[#allocation8 + $0x4c] sm:$0xf]
    %v1406 = vld [vmem:[#allocation8 + $0x50] sm:$0xf]
    %v1407 = vld [vmem:[#allocation8 + $0x54] sm:$0xf]
    %v1408 = vld [vmem:[#allocation8 + $0x58] sm:$0xf]
    %v1409 = vld [vmem:[#allocation8 + $0x5c] sm:$0xf]
    %v1410 = vld [vmem:[#allocation8 + $0x60] sm:$0xf]
    %v1411 = vld [vmem:[#allocation8 + $0x64] sm:$0xf]
    %v1412 = vld [vmem:[#allocation8 + $0x68] sm:$0xf]
    %v1413 = vld [vmem:[#allocation8 + $0x6c] sm:$0xf]
    %v1414 = vld [vmem:[#allocation8 + $0x70] sm:$0xf]
    %v1415 = vld [vmem:[#allocation8 + $0x74] sm:$0xf]
    %v1416 = vld [vmem:[#allocation8 + $0x78] sm:$0xf]
    %v1417 = vld [vmem:[#allocation8 + $0x7c] sm:$0xf]
    %v1418 = vld [vmem:[%s12] sm:$0x1]
    %v1420 = vlaneseq
    %v1421 = vshrl.u32 %v1420, 7
    %v1422 = vsub.s32 0, %v1421
    %v1423 = vrot.slane %v1418, %v1422
    %v1457 = vunpack.c.l.b16 %v1386
    %v1458 = vunpack.c.l.b16 %v1387
    %v1459 = vunpack.c.l.b16 %v1388
    %v1460 = vunpack.c.l.b16 %v1389
    %v1461 = vunpack.c.l.b16 %v1390
    %v1462 = vunpack.c.l.b16 %v1391
    %v1463 = vunpack.c.l.b16 %v1392
    %v1464 = vunpack.c.l.b16 %v1393
    %v1465 = vunpack.c.l.b16 %v1394
    %v1466 = vunpack.c.l.b16 %v1395
    %v1467 = vunpack.c.l.b16 %v1396
    %v1468 = vunpack.c.l.b16 %v1397
    %v1469 = vunpack.c.l.b16 %v1398
    %v1470 = vunpack.c.l.b16 %v1399
    %v1471 = vunpack.c.l.b16 %v1400
    %v1472 = vunpack.c.l.b16 %v1401
    %v1473 = vunpack.c.l.b16 %v1402
    %v1474 = vunpack.c.l.b16 %v1403
    %v1475 = vunpack.c.l.b16 %v1404
    %v1476 = vunpack.c.l.b16 %v1405
    %v1477 = vunpack.c.l.b16 %v1406
    %v1478 = vunpack.c.l.b16 %v1407
    %v1479 = vunpack.c.l.b16 %v1408
    %v1480 = vunpack.c.l.b16 %v1409
    %v1481 = vunpack.c.l.b16 %v1410
    %v1482 = vunpack.c.l.b16 %v1411
    %v1483 = vunpack.c.l.b16 %v1412
    %v1484 = vunpack.c.l.b16 %v1413
    %v1485 = vunpack.c.l.b16 %v1414
    %v1486 = vunpack.c.l.b16 %v1415
    %v1487 = vunpack.c.l.b16 %v1416
    %v1488 = vunpack.c.l.b16 %v1417
    %v1489 = vpack.c.b16 %v1458, %v1457
    %v1490 = vpack.c.b16 %v1460, %v1459
    %v1491 = vpack.c.b16 %v1462, %v1461
    %v1492 = vpack.c.b16 %v1464, %v1463
    %v1493 = vpack.c.b16 %v1466, %v1465
    %v1494 = vpack.c.b16 %v1468, %v1467
    %v1495 = vpack.c.b16 %v1470, %v1469
    %v1496 = vpack.c.b16 %v1472, %v1471
    %v1497 = vpack.c.b16 %v1474, %v1473
    %v1498 = vpack.c.b16 %v1476, %v1475
    %v1499 = vpack.c.b16 %v1478, %v1477
    %v1500 = vpack.c.b16 %v1480, %v1479
    %v1501 = vpack.c.b16 %v1482, %v1481
    %v1502 = vpack.c.b16 %v1484, %v1483
    %v1503 = vpack.c.b16 %v1486, %v1485
    %v1504 = vpack.c.b16 %v1488, %v1487
    %1521 = vmatprep.subr.bf16.mxu0 0
    %1522 = vmatpush1.bf16.msra.mxu0 %v1489
    %1523 = vmatprep.subr.bf16.mxu0 0
    %1524 = vmatpush1.bf16.msra.mxu0 %v1490
    %1525 = vmatprep.subr.bf16.mxu0 0
    %1526 = vmatpush1.bf16.msra.mxu0 %v1491
    %1527 = vmatprep.subr.bf16.mxu0 0
    %1528 = vmatpush1.bf16.msra.mxu0 %v1492
    %1529 = vmatprep.subr.bf16.mxu0 0
    %1530 = vmatpush1.bf16.msra.mxu0 %v1493
    %1531 = vmatprep.subr.bf16.mxu0 0
    %1532 = vmatpush1.bf16.msra.mxu0 %v1494
    %1533 = vmatprep.subr.bf16.mxu0 0
    %1534 = vmatpush1.bf16.msra.mxu0 %v1495
    %1535 = vmatprep.subr.bf16.mxu0 0
    %1536 = vmatpush1.bf16.msra.mxu0 %v1496
    %1537 = vmatprep.subr.bf16.mxu0 0
    %1538 = vmatpush1.bf16.msra.mxu0 %v1497
    %1539 = vmatprep.subr.bf16.mxu0 0
    %1540 = vmatpush1.bf16.msra.mxu0 %v1498
    %1541 = vmatprep.subr.bf16.mxu0 0
    %1542 = vmatpush1.bf16.msra.mxu0 %v1499
    %1543 = vmatprep.subr.bf16.mxu0 0
    %1544 = vmatpush1.bf16.msra.mxu0 %v1500
    %1545 = vmatprep.subr.bf16.mxu0 0
    %1546 = vmatpush1.bf16.msra.mxu0 %v1501
    %1547 = vmatprep.subr.bf16.mxu0 0
    %1548 = vmatpush1.bf16.msra.mxu0 %v1502
    %1549 = vmatprep.subr.bf16.mxu0 0
    %1550 = vmatpush1.bf16.msra.mxu0 %v1503
    %1551 = vmatprep.subr.bf16.mxu0 0
    %1552 = vmatpush1.bf16.msra.mxu0 %v1504
    %1553 = vmatprep.mubr.bf16.mxu0 %v1385
    %1554 = vmatmul.mubr.bf16.gmra.mrb[0].mxu0 %v1384
    %v1555 = vpop.f32.mrb[0].mxu0
    %v1556 = vadd.f32 %v1423, %v1555
    %v1557 = vpop.f32.mrb[0].mxu0
    %v1558 = vpop.f32.mrb[0].mxu0
    %v1559 = vpop.f32.mrb[0].mxu0
    %1560 = vdwg.mxu0
    %v1561 = vtanh.pop %v1556
    %v1562 = vadd.f32 %v1561, 1.0
    %v1563 = vadd.f32 %v1562, -1.0
    %1564 = vst [vmem:[#allocation10] sm:$0xff] %v1563
    // Predicated region
    $region70: #{tpu_custom_call.1} parent=1 // pred_check
      _
    $region71: #{tpu_custom_call.1} parent=1 // pred_check_branch
      %1566 = sbr.rel (0) target = $region73
    $region72: #{tpu_custom_call.1} parent=1 // pred_region
      %s1568 = ssub.s32 128, 128
      %1569 = vsyncadd [#allocation4], %s1568
      %s1571 = sshll.u32 [#allocation10], 4
      %s1572 = int_to_ptr.vmem [resolvable:$true] %s1571
      %1574 = dma.vmem_to_hbm [thread:$0]  %s1572, 128, %s13, [#allocation4]
    $region73: #{tpu_custom_call.1} parent=1 // pred_fallthru
      _
    // Predicated region
    $region74: #{tpu_custom_call.1} parent=1 // pred_check
      _
    $region75: #{tpu_custom_call.1} parent=1 // pred_check_branch
      %1576 = sbr.rel (0) target = $region77
    $region76: #{tpu_custom_call.1} parent=1 // pred_region
      %1577 = dma.done [#allocation4], 128
    $region77: #{tpu_custom_call.1} parent=1 // pred_fallthru
      _
    %1578 = vsyncpa [#allocation3], 1
    %1579 = vsyncpa [#allocation6], 1
    %1580 = vsyncpa [#allocation9], 1
    %1581 = vsyncpa [#allocation4], 1

</llo_original>
